<compile_context>
chip_gen: v5e
topology: v5e:2x2
jax: 0.10.0
libtpu: 0.0.40
codegen_flags: <defaults>
</compile_context>

<pallas_src>
import functools

import jax
import jax.numpy as jnp
import numpy as np
from jax.experimental import pallas as pl
from jax.experimental.pallas import tpu as pltpu

COMMITMENT_COST = 0.25


def _segmented_group_min(v, within, group_size, lanes):
    """All-reduce min over aligned groups of `group_size` lanes (axis=1).

    Bidirectional doubling sweep: after the loop every lane holds the min of its
    own group.  Each fold is gated on "partner lane is in the same group", so no
    value ever crosses a group boundary (and therefore never wraps around the
    array ends either).  `within` is a (1, lanes) f32 row of lane_index % group_size.
    Works for any group_size >= 1.
    """
    s = 1
    while s < group_size:
        plus = pltpu.roll(v, shift=(lanes - s) % lanes, axis=1)   # v[:, p + s]
        minus = pltpu.roll(v, shift=s, axis=1)                    # v[:, p - s]
        v = jnp.where(within + s < group_size, jnp.minimum(v, plus), v)
        v = jnp.where(within >= s, jnp.minimum(v, minus), v)
        s *= 2
    return v


# ----------------------------------------------------------------------------
# Fused kernel: one batch tile per grid step.
#   x tile -> Linear+ReLU -> Linear -> VQ (block-diagonal, all latents at once)
#   -> Linear+ReLU -> Linear -> x_recon tile.
# Also emits per-group-broadcast encoding indices and a lane-dense partial sum
# of (z_q - z_e)^2 for the VQ loss.
# ----------------------------------------------------------------------------
def _vqvae_fused_kernel(x_ref, w1_ref, b1_ref, w2_ref, b2_ref,
                        neg2cbt_ref, e2_ref, within_ref, cbdiag_ref,
                        w3_ref, b3_ref, w4_ref, b4_ref,
                        xrec_ref, idx_ref, loss_ref,
                        *, num_embeddings, compute_dtype):
    f32 = jnp.float32
    E = num_embeddings
    LE = e2_ref.shape[1]

    # ---------------- encoder: Linear(IN,256)+ReLU, Linear(256, L*D) ----------
    # bf16 operands on the MXU, f32 accumulation; bias/ReLU in f32.
    h = jnp.dot(x_ref[...], w1_ref[...], preferred_element_type=f32)
    h = jnp.maximum(h + b1_ref[...], 0.0)
    z_e = jnp.dot(h.astype(compute_dtype), w2_ref[...], preferred_element_type=f32)
    z_e = z_e + b2_ref[...]                                    # (tb, L*D) f32

    # ---------------- vector quantizer (all latents at once) ------------------
    # dist[:, l*E + e] = ||cb_e||^2 - 2 <z_e[:, l*D:(l+1)*D], cb_e>
    # (the row-constant ||z||^2 term is argmin-invariant and dropped).  Kept in
    # f32 so index selection / codebook lookup stay faithful to the reference.
    dist = e2_ref[...] + jnp.dot(z_e, neg2cbt_ref[...], preferred_element_type=f32)
    within = within_ref[...]                                   # (1, LE) f32: lane % E

    gmin = _segmented_group_min(dist, within, E, LE)           # group min, broadcast
    cand = jnp.where(dist == gmin, within, float(E))           # first-occurrence tie-break
    argm = _segmented_group_min(cand, within, E, LE)           # group argmin, broadcast
    idx_ref[...] = argm.astype(jnp.int32)                      # lane-dense (tb, LE)

    onehot = (within == argm).astype(f32)                      # exactly one 1 per group
    q = jnp.dot(onehot, cbdiag_ref[...], preferred_element_type=f32)   # (tb, L*D) = z_q

    diff = q - z_e
    # lane-dense per-tile partial (column sums over the batch tile); finalized
    # and scaled in the wrapper so the batch grid axis stays fully parallel.
    loss_ref[...] = jnp.sum(diff * diff, axis=0, keepdims=True)[None]  # (1, 1, L*D)

    # ---------------- decoder: Linear(L*D,256)+ReLU, Linear(256,IN) -----------
    h2 = jnp.dot(q.astype(compute_dtype), w3_ref[...], preferred_element_type=f32)
    h2 = jnp.maximum(h2 + b3_ref[...], 0.0)
    xr = jnp.dot(h2.astype(compute_dtype), w4_ref[...], preferred_element_type=f32)
    xrec_ref[...] = (xr + b4_ref[...]).astype(xrec_ref.dtype)


# ----------------------------------------------------------------------------
# Wrapper: single fused pallas_call over a parallel batch grid.
# ----------------------------------------------------------------------------
def vqvae_forward(params, x, *, num_latents, embedding_dim,
                  batch_tile=None, compute_dtype=jnp.bfloat16,
                  commitment_cost=COMMITMENT_COST):
    bsz, input_dim = x.shape
    L, D = num_latents, embedding_dim
    f32 = jnp.float32
    codebook = params["codebook"].astype(f32)
    E = codebook.shape[0]
    hidden = params["enc_w1"].shape[1]
    LD, LE = L * D, L * E

    # Batch tile = MXU M dim.  Prefer >=128 rows (multiple of 16 for bf16 sublane
    # packing) at real batch sizes; resident weights + block-diag codebook are
    # well under 1 MiB at these shapes so even tb=512 stays at a few MiB of VMEM.
    # Keeping nb = bsz/tb >= 2 lets the parallel grid use both v7x TensorCores.
    if batch_tile is None:
        batch_tile = min(bsz, 256)
    tb = batch_tile
    if bsz % tb != 0:
        raise ValueError(f"batch {bsz} must be divisible by batch_tile {tb}")
    if tb != bsz and tb % 8 != 0:
        raise ValueError("batch_tile must be a multiple of 8 (sublane tiling)")
    nb = bsz // tb

    # bf16 copies of the big matmul operands (halves weight DMA/VMEM bytes);
    # biases and the codebook operators stay f32.
    w1 = params["enc_w1"].astype(compute_dtype)
    w2 = params["enc_w2"].astype(compute_dtype)
    w3 = params["dec_w1"].astype(compute_dtype)
    w4 = params["dec_w2"].astype(compute_dtype)
    b1 = params["enc_b1"].reshape(1, hidden).astype(f32)
    b2 = params["enc_b2"].reshape(1, LD).astype(f32)
    b3 = params["dec_b1"].reshape(1, hidden).astype(f32)
    b4 = params["dec_b2"].reshape(1, input_dim).astype(f32)

    # Grid-resident block-diagonal codebook operators:
    #   neg2cbt[l*D:(l+1)*D, l*E:(l+1)*E] = -2 * cb^T   (distance cross terms)
    #   cbdiag [l*E:(l+1)*E, l*D:(l+1)*D] = cb          (one-hot lookup -> z_q)
    # plus the hoisted ||cb_e||^2 row and the lane%E row used by the segmented min.
    eye_l = jnp.eye(L, dtype=f32)
    neg2cbt = jnp.kron(eye_l, (-2.0 * codebook).T)              # (LD, LE)
    cbdiag = jnp.kron(eye_l, codebook)                          # (LE, LD)
    e2 = jnp.tile(jnp.sum(codebook * codebook, axis=1), L)[None, :]   # (1, LE)
    within = jnp.tile(jnp.arange(E, dtype=f32), L)[None, :]           # (1, LE)

    kernel = functools.partial(_vqvae_fused_kernel,
                               num_embeddings=E, compute_dtype=compute_dtype)

    resident = lambda i: (0, 0)     # weights / biases / codebook stay VMEM-resident

    x_recon, idx_bcast, loss_part = pl.pallas_call(
        kernel,
        grid=(nb,),
        in_specs=[
            pl.BlockSpec((tb, input_dim), lambda i: (i, 0)),    # x tile (bf16)
            pl.BlockSpec((input_dim, hidden), resident),        # enc W1 (bf16)
            pl.BlockSpec((1, hidden), resident),                # enc b1
            pl.BlockSpec((hidden, LD), resident),               # enc W2 (bf16)
            pl.BlockSpec((1, LD), resident),                    # enc b2
            pl.BlockSpec((LD, LE), resident),                   # -2 * blockdiag(cb^T)
            pl.BlockSpec((1, LE), resident),                    # ||cb||^2 tiled
            pl.BlockSpec((1, LE), resident),                    # lane % E
            pl.BlockSpec((LE, LD), resident),                   # blockdiag(cb)
            pl.BlockSpec((LD, hidden), resident),               # dec W1 (bf16)
            pl.BlockSpec((1, hidden), resident),                # dec b1
            pl.BlockSpec((hidden, input_dim), resident),        # dec W2 (bf16)
            pl.BlockSpec((1, input_dim), resident),             # dec b2
        ],
        out_specs=(
            pl.BlockSpec((tb, input_dim), lambda i: (i, 0)),    # x_recon tile
            pl.BlockSpec((tb, LE), lambda i: (i, 0)),           # indices (group bcast)
            pl.BlockSpec((1, 1, LD), lambda i: (i, 0, 0)),      # loss column sums
        ),
        out_shape=(
            jax.ShapeDtypeStruct((bsz, input_dim), jnp.float32),
            jax.ShapeDtypeStruct((bsz, LE), jnp.int32),
            jax.ShapeDtypeStruct((nb, 1, LD), jnp.float32),
        ),
        compiler_params=pltpu.CompilerParams(
            dimension_semantics=("parallel",),
            vmem_limit_bytes=16 * 1024 * 1024),
    )(x.astype(compute_dtype), w1, b1, w2, b2, neg2cbt, e2, within, cbdiag,
      w3, b3, w4, b4)

    # Each E-lane group carries its latent's index broadcast; take lane 0 of each.
    idx = idx_bcast.reshape(bsz, L, E)[:, :, 0]                 # (B, L) int32

    # vq_loss = mean over latents of (q_latent + commitment * e_latent)
    #         = (1 + commitment) * mean((z_q - z_e)^2) over all B*L*D elements.
    vq_loss = (1.0 + commitment_cost) * jnp.sum(loss_part) / (bsz * L * D)

    # Perplexity: the reference collapses bincount(idx)/numel to its scalar mean,
    # which equals 1/(max_index + 1) per latent; then averages over latents.
    p = 1.0 / (jnp.max(idx, axis=0).astype(jnp.float32) + 1.0)
    perplexity = jnp.mean(jnp.exp(-p * jnp.log(p + 1e-10)))

    encoding_indices = idx[:, :, None]                          # (B, L, 1)
    return x_recon, vq_loss, perplexity, encoding_indices


# ----------------------------------------------------------------------------
# Demo: deterministic params, small shapes, light correctness check.
# ----------------------------------------------------------------------------
if __name__ == "__main__":
    B = 32                  # 2 batch tiles of 16 -> exercises the parallel grid
    INPUT_DIM = 256
    HIDDEN = 256            # fixed by the module definition
    NUM_LATENTS = 8
    EMBEDDING_DIM = 16      # L*D = 128  (lane-dense z_e / z_q)
    NUM_EMBEDDINGS = 32     # L*E = 256  (lane-dense distances / one-hot)
    BATCH_TILE = 16         # multiple of 16 (bf16 sublane packing); small for demo

    key = jax.random.PRNGKey(0)
    k = jax.random.split(key, 10)

    def init_linear(kw, kb, fan_in, fan_out):
        lim = 1.0 / jnp.sqrt(jnp.float32(fan_in))
        w = jax.random.uniform(kw, (fan_in, fan_out), jnp.float32, -lim, lim)
        b = jax.random.uniform(kb, (fan_out,), jnp.float32, -lim, lim)
        return w, b

    enc_w1, enc_b1 = init_linear(k[0], k[1], INPUT_DIM, HIDDEN)
    enc_w2, enc_b2 = init_linear(k[2], k[3], HIDDEN, NUM_LATENTS * EMBEDDING_DIM)
    dec_w1, dec_b1 = init_linear(k[4], k[5], NUM_LATENTS * EMBEDDING_DIM, HIDDEN)
    dec_w2, dec_b2 = init_linear(k[6], k[7], HIDDEN, INPUT_DIM)
    codebook = jax.random.uniform(
        k[8], (NUM_EMBEDDINGS, EMBEDDING_DIM), jnp.float32,
        -1.0 / NUM_EMBEDDINGS, 1.0 / NUM_EMBEDDINGS)

    params = dict(
        enc_w1=enc_w1, enc_b1=enc_b1, enc_w2=enc_w2, enc_b2=enc_b2,
        dec_w1=dec_w1, dec_b1=dec_b1, dec_w2=dec_w2, dec_b2=dec_b2,
        codebook=codebook,
    )
    x = jax.random.normal(k[9], (B, INPUT_DIM), jnp.float32)

    fwd = jax.jit(functools.partial(
        vqvae_forward, num_latents=NUM_LATENTS, embedding_dim=EMBEDDING_DIM,
        batch_tile=BATCH_TILE))

    x_recon, vq_loss, perplexity, enc_idx = fwd(params, x)
    jax.block_until_ready((x_recon, vq_loss, perplexity, enc_idx))

    assert x_recon.shape == (B, INPUT_DIM)
    assert enc_idx.shape == (B, NUM_LATENTS, 1)
    assert vq_loss.shape == () and perplexity.shape == ()
    assert bool(jnp.isfinite(vq_loss)) and bool(jnp.isfinite(perplexity))

    # ---- light correctness check (mirrors the kernel's bf16-MXU numerics) ----
    f32, bf16 = jnp.float32, jnp.bfloat16

    def lin(v, w, b):
        return jnp.dot(v.astype(bf16), w.astype(bf16),
                       preferred_element_type=f32) + b

    h_chk = jnp.maximum(lin(x, enc_w1, enc_b1), 0.0)
    z_chk = lin(h_chk, enc_w2, enc_b2).reshape(B * NUM_LATENTS, EMBEDDING_DIM)

    # (1) every chosen code is (near-)distance-optimal for its latent
    d_full = (jnp.sum(z_chk ** 2, axis=1, keepdims=True)
              + jnp.sum(codebook ** 2, axis=1)[None, :]
              - 2.0 * jnp.dot(z_chk, codebook.T,
                              precision=jax.lax.Precision.HIGHEST))
    idx_k = enc_idx[:, :, 0].reshape(-1)                        # row order b*L + l
    chosen = jnp.take_along_axis(d_full, idx_k[:, None], axis=1)[:, 0]
    assert bool(jnp.all(chosen <= jnp.min(d_full, axis=1) + 2e-3))

    # (2) loss / reconstruction recomputed from the kernel's own indices
    q_chk = codebook[idx_k]
    loss_chk = (1.0 + COMMITMENT_COST) * jnp.mean((q_chk - z_chk) ** 2)
    np.testing.assert_allclose(np.asarray(vq_loss), np.asarray(loss_chk),
                               rtol=1e-2, atol=1e-3)

    zq_chk = q_chk.reshape(B, NUM_LATENTS * EMBEDDING_DIM)
    h2_chk = jnp.maximum(lin(zq_chk, dec_w1, dec_b1), 0.0)
    xrec_chk = lin(h2_chk, dec_w2, dec_b2)
    np.testing.assert_allclose(np.asarray(x_recon), np.asarray(xrec_chk),
                               rtol=1e-2, atol=5e-3)

    print("KERNEL_OK")
</pallas_src>

<mosaic_0001>
module attributes {stable_mosaic.version = 11 : i64} {
  func.func @_vqvae_fused_kernel(%arg0: i32, %arg1: memref<16x256xbf16, #tpu.memory_space<vmem>>, %arg2: memref<256x256xbf16, #tpu.memory_space<vmem>>, %arg3: memref<1x256xf32, #tpu.memory_space<vmem>>, %arg4: memref<256x128xbf16, #tpu.memory_space<vmem>>, %arg5: memref<1x128xf32, #tpu.memory_space<vmem>>, %arg6: memref<128x256xf32, #tpu.memory_space<vmem>>, %arg7: memref<1x256xf32, #tpu.memory_space<vmem>>, %arg8: memref<1x256xf32, #tpu.memory_space<vmem>>, %arg9: memref<256x128xf32, #tpu.memory_space<vmem>>, %arg10: memref<128x256xbf16, #tpu.memory_space<vmem>>, %arg11: memref<1x256xf32, #tpu.memory_space<vmem>>, %arg12: memref<256x256xbf16, #tpu.memory_space<vmem>>, %arg13: memref<1x256xf32, #tpu.memory_space<vmem>>, %arg14: memref<16x256xf32, #tpu.memory_space<vmem>>, %arg15: memref<16x256xi32, #tpu.memory_space<vmem>>, %arg16: memref<1x1x128xf32, #tpu.memory_space<vmem>>) attributes {dimension_semantics = [#tpu.dimension_semantics<parallel>], iteration_bounds = array<i64: 2>, scalar_prefetch = 0 : i64, scratch_operands = 0 : i64, tpu.core_type = #tpu.core_type<tc>, window_params = [{transform_indices = @transform_0, window_bounds = array<i64: 16, 256>}, {pipeline_mode = #tpu.pipeline_mode<synchronous>, transform_indices = @transform_1, window_bounds = array<i64: 256, 256>}, {pipeline_mode = #tpu.pipeline_mode<synchronous>, transform_indices = @transform_2, window_bounds = array<i64: 1, 256>}, {pipeline_mode = #tpu.pipeline_mode<synchronous>, transform_indices = @transform_3, window_bounds = array<i64: 256, 128>}, {pipeline_mode = #tpu.pipeline_mode<synchronous>, transform_indices = @transform_4, window_bounds = array<i64: 1, 128>}, {pipeline_mode = #tpu.pipeline_mode<synchronous>, transform_indices = @transform_5, window_bounds = array<i64: 128, 256>}, {pipeline_mode = #tpu.pipeline_mode<synchronous>, transform_indices = @transform_6, window_bounds = array<i64: 1, 256>}, {pipeline_mode = #tpu.pipeline_mode<synchronous>, transform_indices = @transform_7, window_bounds = array<i64: 1, 256>}, {pipeline_mode = #tpu.pipeline_mode<synchronous>, transform_indices = @transform_8, window_bounds = array<i64: 256, 128>}, {pipeline_mode = #tpu.pipeline_mode<synchronous>, transform_indices = @transform_9, window_bounds = array<i64: 128, 256>}, {pipeline_mode = #tpu.pipeline_mode<synchronous>, transform_indices = @transform_10, window_bounds = array<i64: 1, 256>}, {pipeline_mode = #tpu.pipeline_mode<synchronous>, transform_indices = @transform_11, window_bounds = array<i64: 256, 256>}, {pipeline_mode = #tpu.pipeline_mode<synchronous>, transform_indices = @transform_12, window_bounds = array<i64: 1, 256>}, {transform_indices = @transform_13, window_bounds = array<i64: 16, 256>}, {transform_indices = @transform_14, window_bounds = array<i64: 16, 256>}, {transform_indices = @transform_15, window_bounds = array<i64: 1, 1, 128>}]} {
    %c0 = arith.constant 0 : index
    %c0_0 = arith.constant 0 : index
    %0 = vector.load %arg1[%c0, %c0_0] : memref<16x256xbf16, #tpu.memory_space<vmem>>, vector<16x256xbf16>
    %c0_1 = arith.constant 0 : index
    %c0_2 = arith.constant 0 : index
    %1 = vector.load %arg2[%c0_1, %c0_2] : memref<256x256xbf16, #tpu.memory_space<vmem>>, vector<256x256xbf16>
    %cst = arith.constant dense<0.000000e+00> : vector<16x256xf32>
    %2 = tpu.matmul %0, %1, %cst {dimension_numbers = #tpu.dot_dimension_numbers<[1], [0], [0], [1], [0, 0, 1, 1], [], []>} : vector<16x256xbf16>, vector<256x256xbf16>, vector<16x256xf32> -> vector<16x256xf32>
    %c0_3 = arith.constant 0 : index
    %c0_4 = arith.constant 0 : index
    %3 = vector.load %arg3[%c0_3, %c0_4] : memref<1x256xf32, #tpu.memory_space<vmem>>, vector<1x256xf32>
    %4 = vector.broadcast %3 : vector<1x256xf32> to vector<16x256xf32>
    %5 = arith.addf %2, %4 : vector<16x256xf32>
    %cst_5 = arith.constant 0.000000e+00 : f32
    %6 = vector.broadcast %cst_5 : f32 to vector<16x256xf32>
    %7 = arith.maximumf %5, %6 : vector<16x256xf32>
    %8 = arith.truncf %7 : vector<16x256xf32> to vector<16x256xbf16>
    %c0_6 = arith.constant 0 : index
    %c0_7 = arith.constant 0 : index
    %9 = vector.load %arg4[%c0_6, %c0_7] : memref<256x128xbf16, #tpu.memory_space<vmem>>, vector<256x128xbf16>
    %cst_8 = arith.constant dense<0.000000e+00> : vector<16x128xf32>
    %10 = tpu.matmul %8, %9, %cst_8 {dimension_numbers = #tpu.dot_dimension_numbers<[1], [0], [0], [1], [0, 0, 1, 1], [], []>} : vector<16x256xbf16>, vector<256x128xbf16>, vector<16x128xf32> -> vector<16x128xf32>
    %c0_9 = arith.constant 0 : index
    %c0_10 = arith.constant 0 : index
    %11 = vector.load %arg5[%c0_9, %c0_10] : memref<1x128xf32, #tpu.memory_space<vmem>>, vector<1x128xf32>
    %12 = vector.broadcast %11 : vector<1x128xf32> to vector<16x128xf32>
    %13 = arith.addf %10, %12 : vector<16x128xf32>
    %c0_11 = arith.constant 0 : index
    %c0_12 = arith.constant 0 : index
    %14 = vector.load %arg7[%c0_11, %c0_12] : memref<1x256xf32, #tpu.memory_space<vmem>>, vector<1x256xf32>
    %c0_13 = arith.constant 0 : index
    %c0_14 = arith.constant 0 : index
    %15 = vector.load %arg6[%c0_13, %c0_14] : memref<128x256xf32, #tpu.memory_space<vmem>>, vector<128x256xf32>
    %cst_15 = arith.constant dense<0.000000e+00> : vector<16x256xf32>
    %16 = tpu.matmul %13, %15, %cst_15 {dimension_numbers = #tpu.dot_dimension_numbers<[1], [0], [0], [1], [0, 0, 1, 1], [], []>} : vector<16x128xf32>, vector<128x256xf32>, vector<16x256xf32> -> vector<16x256xf32>
    %17 = vector.broadcast %14 : vector<1x256xf32> to vector<16x256xf32>
    %18 = arith.addf %17, %16 : vector<16x256xf32>
    %c0_16 = arith.constant 0 : index
    %c0_17 = arith.constant 0 : index
    %19 = vector.load %arg8[%c0_16, %c0_17] : memref<1x256xf32, #tpu.memory_space<vmem>>, vector<1x256xf32>
    %c255_i32 = arith.constant 255 : i32
    %20 = tpu.dynamic_rotate %18 by %c255_i32 dim 1 : vector<16x256xf32>, i32 -> vector<16x256xf32>
    %c1_i32 = arith.constant 1 : i32
    %21 = tpu.dynamic_rotate %18 by %c1_i32 dim 1 : vector<16x256xf32>, i32 -> vector<16x256xf32>
    %cst_18 = arith.constant 1.000000e+00 : f32
    %22 = vector.broadcast %cst_18 : f32 to vector<1x256xf32>
    %23 = arith.addf %19, %22 : vector<1x256xf32>
    %cst_19 = arith.constant 3.200000e+01 : f32
    %24 = vector.broadcast %cst_19 : f32 to vector<1x256xf32>
    %25 = arith.cmpf olt, %23, %24 : vector<1x256xf32>
    %26 = arith.minimumf %18, %20 : vector<16x256xf32>
    %27 = vector.shape_cast %25 : vector<1x256xi1> to vector<1x256xi1>
    %28 = vector.broadcast %27 : vector<1x256xi1> to vector<16x256xi1>
    %29 = arith.select %28, %26, %18 : vector<16x256xi1>, vector<16x256xf32>
    %cst_20 = arith.constant 1.000000e+00 : f32
    %30 = vector.broadcast %cst_20 : f32 to vector<1x256xf32>
    %31 = arith.cmpf oge, %19, %30 : vector<1x256xf32>
    %32 = arith.minimumf %29, %21 : vector<16x256xf32>
    %33 = vector.shape_cast %31 : vector<1x256xi1> to vector<1x256xi1>
    %34 = vector.broadcast %33 : vector<1x256xi1> to vector<16x256xi1>
    %35 = arith.select %34, %32, %29 : vector<16x256xi1>, vector<16x256xf32>
    %c254_i32 = arith.constant 254 : i32
    %36 = tpu.dynamic_rotate %35 by %c254_i32 dim 1 : vector<16x256xf32>, i32 -> vector<16x256xf32>
    %c2_i32 = arith.constant 2 : i32
    %37 = tpu.dynamic_rotate %35 by %c2_i32 dim 1 : vector<16x256xf32>, i32 -> vector<16x256xf32>
    %cst_21 = arith.constant 2.000000e+00 : f32
    %38 = vector.broadcast %cst_21 : f32 to vector<1x256xf32>
    %39 = arith.addf %19, %38 : vector<1x256xf32>
    %cst_22 = arith.constant 3.200000e+01 : f32
    %40 = vector.broadcast %cst_22 : f32 to vector<1x256xf32>
    %41 = arith.cmpf olt, %39, %40 : vector<1x256xf32>
    %42 = arith.minimumf %35, %36 : vector<16x256xf32>
    %43 = vector.shape_cast %41 : vector<1x256xi1> to vector<1x256xi1>
    %44 = vector.broadcast %43 : vector<1x256xi1> to vector<16x256xi1>
    %45 = arith.select %44, %42, %35 : vector<16x256xi1>, vector<16x256xf32>
    %cst_23 = arith.constant 2.000000e+00 : f32
    %46 = vector.broadcast %cst_23 : f32 to vector<1x256xf32>
    %47 = arith.cmpf oge, %19, %46 : vector<1x256xf32>
    %48 = arith.minimumf %45, %37 : vector<16x256xf32>
    %49 = vector.shape_cast %47 : vector<1x256xi1> to vector<1x256xi1>
    %50 = vector.broadcast %49 : vector<1x256xi1> to vector<16x256xi1>
    %51 = arith.select %50, %48, %45 : vector<16x256xi1>, vector<16x256xf32>
    %c252_i32 = arith.constant 252 : i32
    %52 = tpu.dynamic_rotate %51 by %c252_i32 dim 1 : vector<16x256xf32>, i32 -> vector<16x256xf32>
    %c4_i32 = arith.constant 4 : i32
    %53 = tpu.dynamic_rotate %51 by %c4_i32 dim 1 : vector<16x256xf32>, i32 -> vector<16x256xf32>
    %cst_24 = arith.constant 4.000000e+00 : f32
    %54 = vector.broadcast %cst_24 : f32 to vector<1x256xf32>
    %55 = arith.addf %19, %54 : vector<1x256xf32>
    %cst_25 = arith.constant 3.200000e+01 : f32
    %56 = vector.broadcast %cst_25 : f32 to vector<1x256xf32>
    %57 = arith.cmpf olt, %55, %56 : vector<1x256xf32>
    %58 = arith.minimumf %51, %52 : vector<16x256xf32>
    %59 = vector.shape_cast %57 : vector<1x256xi1> to vector<1x256xi1>
    %60 = vector.broadcast %59 : vector<1x256xi1> to vector<16x256xi1>
    %61 = arith.select %60, %58, %51 : vector<16x256xi1>, vector<16x256xf32>
    %cst_26 = arith.constant 4.000000e+00 : f32
    %62 = vector.broadcast %cst_26 : f32 to vector<1x256xf32>
    %63 = arith.cmpf oge, %19, %62 : vector<1x256xf32>
    %64 = arith.minimumf %61, %53 : vector<16x256xf32>
    %65 = vector.shape_cast %63 : vector<1x256xi1> to vector<1x256xi1>
    %66 = vector.broadcast %65 : vector<1x256xi1> to vector<16x256xi1>
    %67 = arith.select %66, %64, %61 : vector<16x256xi1>, vector<16x256xf32>
    %c248_i32 = arith.constant 248 : i32
    %68 = tpu.dynamic_rotate %67 by %c248_i32 dim 1 : vector<16x256xf32>, i32 -> vector<16x256xf32>
    %c8_i32 = arith.constant 8 : i32
    %69 = tpu.dynamic_rotate %67 by %c8_i32 dim 1 : vector<16x256xf32>, i32 -> vector<16x256xf32>
    %cst_27 = arith.constant 8.000000e+00 : f32
    %70 = vector.broadcast %cst_27 : f32 to vector<1x256xf32>
    %71 = arith.addf %19, %70 : vector<1x256xf32>
    %cst_28 = arith.constant 3.200000e+01 : f32
    %72 = vector.broadcast %cst_28 : f32 to vector<1x256xf32>
    %73 = arith.cmpf olt, %71, %72 : vector<1x256xf32>
    %74 = arith.minimumf %67, %68 : vector<16x256xf32>
    %75 = vector.shape_cast %73 : vector<1x256xi1> to vector<1x256xi1>
    %76 = vector.broadcast %75 : vector<1x256xi1> to vector<16x256xi1>
    %77 = arith.select %76, %74, %67 : vector<16x256xi1>, vector<16x256xf32>
    %cst_29 = arith.constant 8.000000e+00 : f32
    %78 = vector.broadcast %cst_29 : f32 to vector<1x256xf32>
    %79 = arith.cmpf oge, %19, %78 : vector<1x256xf32>
    %80 = arith.minimumf %77, %69 : vector<16x256xf32>
    %81 = vector.shape_cast %79 : vector<1x256xi1> to vector<1x256xi1>
    %82 = vector.broadcast %81 : vector<1x256xi1> to vector<16x256xi1>
    %83 = arith.select %82, %80, %77 : vector<16x256xi1>, vector<16x256xf32>
    %c240_i32 = arith.constant 240 : i32
    %84 = tpu.dynamic_rotate %83 by %c240_i32 dim 1 : vector<16x256xf32>, i32 -> vector<16x256xf32>
    %c16_i32 = arith.constant 16 : i32
    %85 = tpu.dynamic_rotate %83 by %c16_i32 dim 1 : vector<16x256xf32>, i32 -> vector<16x256xf32>
    %cst_30 = arith.constant 1.600000e+01 : f32
    %86 = vector.broadcast %cst_30 : f32 to vector<1x256xf32>
    %87 = arith.addf %19, %86 : vector<1x256xf32>
    %cst_31 = arith.constant 3.200000e+01 : f32
    %88 = vector.broadcast %cst_31 : f32 to vector<1x256xf32>
    %89 = arith.cmpf olt, %87, %88 : vector<1x256xf32>
    %90 = arith.minimumf %83, %84 : vector<16x256xf32>
    %91 = vector.shape_cast %89 : vector<1x256xi1> to vector<1x256xi1>
    %92 = vector.broadcast %91 : vector<1x256xi1> to vector<16x256xi1>
    %93 = arith.select %92, %90, %83 : vector<16x256xi1>, vector<16x256xf32>
    %cst_32 = arith.constant 1.600000e+01 : f32
    %94 = vector.broadcast %cst_32 : f32 to vector<1x256xf32>
    %95 = arith.cmpf oge, %19, %94 : vector<1x256xf32>
    %96 = arith.minimumf %93, %85 : vector<16x256xf32>
    %97 = vector.shape_cast %95 : vector<1x256xi1> to vector<1x256xi1>
    %98 = vector.broadcast %97 : vector<1x256xi1> to vector<16x256xi1>
    %99 = arith.select %98, %96, %93 : vector<16x256xi1>, vector<16x256xf32>
    %100 = arith.cmpf oeq, %18, %99 : vector<16x256xf32>
    %cst_33 = arith.constant 3.200000e+01 : f32
    %101 = vector.shape_cast %19 : vector<1x256xf32> to vector<1x256xf32>
    %102 = vector.broadcast %101 : vector<1x256xf32> to vector<16x256xf32>
    %103 = vector.broadcast %cst_33 : f32 to vector<16x256xf32>
    %104 = arith.select %100, %102, %103 : vector<16x256xi1>, vector<16x256xf32>
    %c255_i32_34 = arith.constant 255 : i32
    %105 = tpu.dynamic_rotate %104 by %c255_i32_34 dim 1 : vector<16x256xf32>, i32 -> vector<16x256xf32>
    %c1_i32_35 = arith.constant 1 : i32
    %106 = tpu.dynamic_rotate %104 by %c1_i32_35 dim 1 : vector<16x256xf32>, i32 -> vector<16x256xf32>
    %cst_36 = arith.constant 1.000000e+00 : f32
    %107 = vector.broadcast %cst_36 : f32 to vector<1x256xf32>
    %108 = arith.addf %19, %107 : vector<1x256xf32>
    %cst_37 = arith.constant 3.200000e+01 : f32
    %109 = vector.broadcast %cst_37 : f32 to vector<1x256xf32>
    %110 = arith.cmpf olt, %108, %109 : vector<1x256xf32>
    %111 = arith.minimumf %104, %105 : vector<16x256xf32>
    %112 = vector.shape_cast %110 : vector<1x256xi1> to vector<1x256xi1>
    %113 = vector.broadcast %112 : vector<1x256xi1> to vector<16x256xi1>
    %114 = arith.select %113, %111, %104 : vector<16x256xi1>, vector<16x256xf32>
    %cst_38 = arith.constant 1.000000e+00 : f32
    %115 = vector.broadcast %cst_38 : f32 to vector<1x256xf32>
    %116 = arith.cmpf oge, %19, %115 : vector<1x256xf32>
    %117 = arith.minimumf %114, %106 : vector<16x256xf32>
    %118 = vector.shape_cast %116 : vector<1x256xi1> to vector<1x256xi1>
    %119 = vector.broadcast %118 : vector<1x256xi1> to vector<16x256xi1>
    %120 = arith.select %119, %117, %114 : vector<16x256xi1>, vector<16x256xf32>
    %c254_i32_39 = arith.constant 254 : i32
    %121 = tpu.dynamic_rotate %120 by %c254_i32_39 dim 1 : vector<16x256xf32>, i32 -> vector<16x256xf32>
    %c2_i32_40 = arith.constant 2 : i32
    %122 = tpu.dynamic_rotate %120 by %c2_i32_40 dim 1 : vector<16x256xf32>, i32 -> vector<16x256xf32>
    %cst_41 = arith.constant 2.000000e+00 : f32
    %123 = vector.broadcast %cst_41 : f32 to vector<1x256xf32>
    %124 = arith.addf %19, %123 : vector<1x256xf32>
    %cst_42 = arith.constant 3.200000e+01 : f32
    %125 = vector.broadcast %cst_42 : f32 to vector<1x256xf32>
    %126 = arith.cmpf olt, %124, %125 : vector<1x256xf32>
    %127 = arith.minimumf %120, %121 : vector<16x256xf32>
    %128 = vector.shape_cast %126 : vector<1x256xi1> to vector<1x256xi1>
    %129 = vector.broadcast %128 : vector<1x256xi1> to vector<16x256xi1>
    %130 = arith.select %129, %127, %120 : vector<16x256xi1>, vector<16x256xf32>
    %cst_43 = arith.constant 2.000000e+00 : f32
    %131 = vector.broadcast %cst_43 : f32 to vector<1x256xf32>
    %132 = arith.cmpf oge, %19, %131 : vector<1x256xf32>
    %133 = arith.minimumf %130, %122 : vector<16x256xf32>
    %134 = vector.shape_cast %132 : vector<1x256xi1> to vector<1x256xi1>
    %135 = vector.broadcast %134 : vector<1x256xi1> to vector<16x256xi1>
    %136 = arith.select %135, %133, %130 : vector<16x256xi1>, vector<16x256xf32>
    %c252_i32_44 = arith.constant 252 : i32
    %137 = tpu.dynamic_rotate %136 by %c252_i32_44 dim 1 : vector<16x256xf32>, i32 -> vector<16x256xf32>
    %c4_i32_45 = arith.constant 4 : i32
    %138 = tpu.dynamic_rotate %136 by %c4_i32_45 dim 1 : vector<16x256xf32>, i32 -> vector<16x256xf32>
    %cst_46 = arith.constant 4.000000e+00 : f32
    %139 = vector.broadcast %cst_46 : f32 to vector<1x256xf32>
    %140 = arith.addf %19, %139 : vector<1x256xf32>
    %cst_47 = arith.constant 3.200000e+01 : f32
    %141 = vector.broadcast %cst_47 : f32 to vector<1x256xf32>
    %142 = arith.cmpf olt, %140, %141 : vector<1x256xf32>
    %143 = arith.minimumf %136, %137 : vector<16x256xf32>
    %144 = vector.shape_cast %142 : vector<1x256xi1> to vector<1x256xi1>
    %145 = vector.broadcast %144 : vector<1x256xi1> to vector<16x256xi1>
    %146 = arith.select %145, %143, %136 : vector<16x256xi1>, vector<16x256xf32>
    %cst_48 = arith.constant 4.000000e+00 : f32
    %147 = vector.broadcast %cst_48 : f32 to vector<1x256xf32>
    %148 = arith.cmpf oge, %19, %147 : vector<1x256xf32>
    %149 = arith.minimumf %146, %138 : vector<16x256xf32>
    %150 = vector.shape_cast %148 : vector<1x256xi1> to vector<1x256xi1>
    %151 = vector.broadcast %150 : vector<1x256xi1> to vector<16x256xi1>
    %152 = arith.select %151, %149, %146 : vector<16x256xi1>, vector<16x256xf32>
    %c248_i32_49 = arith.constant 248 : i32
    %153 = tpu.dynamic_rotate %152 by %c248_i32_49 dim 1 : vector<16x256xf32>, i32 -> vector<16x256xf32>
    %c8_i32_50 = arith.constant 8 : i32
    %154 = tpu.dynamic_rotate %152 by %c8_i32_50 dim 1 : vector<16x256xf32>, i32 -> vector<16x256xf32>
    %cst_51 = arith.constant 8.000000e+00 : f32
    %155 = vector.broadcast %cst_51 : f32 to vector<1x256xf32>
    %156 = arith.addf %19, %155 : vector<1x256xf32>
    %cst_52 = arith.constant 3.200000e+01 : f32
    %157 = vector.broadcast %cst_52 : f32 to vector<1x256xf32>
    %158 = arith.cmpf olt, %156, %157 : vector<1x256xf32>
    %159 = arith.minimumf %152, %153 : vector<16x256xf32>
    %160 = vector.shape_cast %158 : vector<1x256xi1> to vector<1x256xi1>
    %161 = vector.broadcast %160 : vector<1x256xi1> to vector<16x256xi1>
    %162 = arith.select %161, %159, %152 : vector<16x256xi1>, vector<16x256xf32>
    %cst_53 = arith.constant 8.000000e+00 : f32
    %163 = vector.broadcast %cst_53 : f32 to vector<1x256xf32>
    %164 = arith.cmpf oge, %19, %163 : vector<1x256xf32>
    %165 = arith.minimumf %162, %154 : vector<16x256xf32>
    %166 = vector.shape_cast %164 : vector<1x256xi1> to vector<1x256xi1>
    %167 = vector.broadcast %166 : vector<1x256xi1> to vector<16x256xi1>
    %168 = arith.select %167, %165, %162 : vector<16x256xi1>, vector<16x256xf32>
    %c240_i32_54 = arith.constant 240 : i32
    %169 = tpu.dynamic_rotate %168 by %c240_i32_54 dim 1 : vector<16x256xf32>, i32 -> vector<16x256xf32>
    %c16_i32_55 = arith.constant 16 : i32
    %170 = tpu.dynamic_rotate %168 by %c16_i32_55 dim 1 : vector<16x256xf32>, i32 -> vector<16x256xf32>
    %cst_56 = arith.constant 1.600000e+01 : f32
    %171 = vector.broadcast %cst_56 : f32 to vector<1x256xf32>
    %172 = arith.addf %19, %171 : vector<1x256xf32>
    %cst_57 = arith.constant 3.200000e+01 : f32
    %173 = vector.broadcast %cst_57 : f32 to vector<1x256xf32>
    %174 = arith.cmpf olt, %172, %173 : vector<1x256xf32>
    %175 = arith.minimumf %168, %169 : vector<16x256xf32>
    %176 = vector.shape_cast %174 : vector<1x256xi1> to vector<1x256xi1>
    %177 = vector.broadcast %176 : vector<1x256xi1> to vector<16x256xi1>
    %178 = arith.select %177, %175, %168 : vector<16x256xi1>, vector<16x256xf32>
    %cst_58 = arith.constant 1.600000e+01 : f32
    %179 = vector.broadcast %cst_58 : f32 to vector<1x256xf32>
    %180 = arith.cmpf oge, %19, %179 : vector<1x256xf32>
    %181 = arith.minimumf %178, %170 : vector<16x256xf32>
    %182 = vector.shape_cast %180 : vector<1x256xi1> to vector<1x256xi1>
    %183 = vector.broadcast %182 : vector<1x256xi1> to vector<16x256xi1>
    %184 = arith.select %183, %181, %178 : vector<16x256xi1>, vector<16x256xf32>
    %185 = arith.fptosi %184 : vector<16x256xf32> to vector<16x256xi32>
    %c0_59 = arith.constant 0 : index
    %c0_60 = arith.constant 0 : index
    %186 = vector.load %arg15[%c0_59, %c0_60] : memref<16x256xi32, #tpu.memory_space<vmem>>, vector<16x256xi32>
    tpu.vector_store %arg15[%c0_59, %c0_60], %185 {strides = array<i32>} : memref<16x256xi32, #tpu.memory_space<vmem>>, vector<16x256xi32>,
    %187 = vector.broadcast %19 : vector<1x256xf32> to vector<16x256xf32>
    %188 = arith.cmpf oeq, %187, %184 : vector<16x256xf32>
    %189 = arith.extui %188 : vector<16x256xi1> to vector<16x256xi32>
    %190 = arith.sitofp %189 : vector<16x256xi32> to vector<16x256xf32>
    %c0_61 = arith.constant 0 : index
    %c0_62 = arith.constant 0 : index
    %191 = vector.load %arg9[%c0_61, %c0_62] : memref<256x128xf32, #tpu.memory_space<vmem>>, vector<256x128xf32>
    %cst_63 = arith.constant dense<0.000000e+00> : vector<16x128xf32>
    %192 = tpu.matmul %190, %191, %cst_63 {dimension_numbers = #tpu.dot_dimension_numbers<[1], [0], [0], [1], [0, 0, 1, 1], [], []>} : vector<16x256xf32>, vector<256x128xf32>, vector<16x128xf32> -> vector<16x128xf32>
    %193 = arith.subf %192, %13 : vector<16x128xf32>
    %194 = arith.mulf %193, %193 : vector<16x128xf32>
    %cst_64 = arith.constant dense<0.000000e+00> : vector<128xf32>
    %195 = vector.multi_reduction <add>, %194, %cst_64 [0] : vector<16x128xf32> to vector<128xf32>
    %196 = vector.shape_cast %195 : vector<128xf32> to vector<1x128xf32>
    %197 = vector.shape_cast %196 : vector<1x128xf32> to vector<1x1x128xf32>
    %c0_65 = arith.constant 0 : index
    %c0_66 = arith.constant 0 : index
    %c0_67 = arith.constant 0 : index
    %198 = vector.load %arg16[%c0_65, %c0_66, %c0_67] : memref<1x1x128xf32, #tpu.memory_space<vmem>>, vector<1x1x128xf32>
    tpu.vector_store %arg16[%c0_65, %c0_66, %c0_67], %197 {strides = array<i32>} : memref<1x1x128xf32, #tpu.memory_space<vmem>>, vector<1x1x128xf32>,
    %199 = arith.truncf %192 : vector<16x128xf32> to vector<16x128xbf16>
    %c0_68 = arith.constant 0 : index
    %c0_69 = arith.constant 0 : index
    %200 = vector.load %arg10[%c0_68, %c0_69] : memref<128x256xbf16, #tpu.memory_space<vmem>>, vector<128x256xbf16>
    %cst_70 = arith.constant dense<0.000000e+00> : vector<16x256xf32>
    %201 = tpu.matmul %199, %200, %cst_70 {dimension_numbers = #tpu.dot_dimension_numbers<[1], [0], [0], [1], [0, 0, 1, 1], [], []>} : vector<16x128xbf16>, vector<128x256xbf16>, vector<16x256xf32> -> vector<16x256xf32>
    %c0_71 = arith.constant 0 : index
    %c0_72 = arith.constant 0 : index
    %202 = vector.load %arg11[%c0_71, %c0_72] : memref<1x256xf32, #tpu.memory_space<vmem>>, vector<1x256xf32>
    %203 = vector.broadcast %202 : vector<1x256xf32> to vector<16x256xf32>
    %204 = arith.addf %201, %203 : vector<16x256xf32>
    %cst_73 = arith.constant 0.000000e+00 : f32
    %205 = vector.broadcast %cst_73 : f32 to vector<16x256xf32>
    %206 = arith.maximumf %204, %205 : vector<16x256xf32>
    %207 = arith.truncf %206 : vector<16x256xf32> to vector<16x256xbf16>
    %c0_74 = arith.constant 0 : index
    %c0_75 = arith.constant 0 : index
    %208 = vector.load %arg12[%c0_74, %c0_75] : memref<256x256xbf16, #tpu.memory_space<vmem>>, vector<256x256xbf16>
    %cst_76 = arith.constant dense<0.000000e+00> : vector<16x256xf32>
    %209 = tpu.matmul %207, %208, %cst_76 {dimension_numbers = #tpu.dot_dimension_numbers<[1], [0], [0], [1], [0, 0, 1, 1], [], []>} : vector<16x256xbf16>, vector<256x256xbf16>, vector<16x256xf32> -> vector<16x256xf32>
    %c0_77 = arith.constant 0 : index
    %c0_78 = arith.constant 0 : index
    %210 = vector.load %arg13[%c0_77, %c0_78] : memref<1x256xf32, #tpu.memory_space<vmem>>, vector<1x256xf32>
    %211 = vector.broadcast %210 : vector<1x256xf32> to vector<16x256xf32>
    %212 = arith.addf %209, %211 : vector<16x256xf32>
    %c0_79 = arith.constant 0 : index
    %c0_80 = arith.constant 0 : index
    %213 = vector.load %arg14[%c0_79, %c0_80] : memref<16x256xf32, #tpu.memory_space<vmem>>, vector<16x256xf32>
    tpu.vector_store %arg14[%c0_79, %c0_80], %212 {strides = array<i32>} : memref<16x256xf32, #tpu.memory_space<vmem>>, vector<16x256xf32>,
    return
  }
  func.func @transform_0(%arg0: i32) -> (i32, i32) {
    %c0_i32 = arith.constant 0 : i32
    %c0_i32_0 = arith.constant 0 : i32
    return %arg0, %c0_i32 : i32, i32
  }
  func.func @transform_1(%arg0: i32) -> (i32, i32) {
    %c0_i32 = arith.constant 0 : i32
    %c0_i32_0 = arith.constant 0 : i32
    %c0_i32_1 = arith.constant 0 : i32
    return %c0_i32, %c0_i32_0 : i32, i32
  }
  func.func @transform_2(%arg0: i32) -> (i32, i32) {
    %c0_i32 = arith.constant 0 : i32
    %c0_i32_0 = arith.constant 0 : i32
    %c0_i32_1 = arith.constant 0 : i32
    return %c0_i32, %c0_i32_0 : i32, i32
  }
  func.func @transform_3(%arg0: i32) -> (i32, i32) {
    %c0_i32 = arith.constant 0 : i32
    %c0_i32_0 = arith.constant 0 : i32
    %c0_i32_1 = arith.constant 0 : i32
    return %c0_i32, %c0_i32_0 : i32, i32
  }
  func.func @transform_4(%arg0: i32) -> (i32, i32) {
    %c0_i32 = arith.constant 0 : i32
    %c0_i32_0 = arith.constant 0 : i32
    %c0_i32_1 = arith.constant 0 : i32
    return %c0_i32, %c0_i32_0 : i32, i32
  }
  func.func @transform_5(%arg0: i32) -> (i32, i32) {
    %c0_i32 = arith.constant 0 : i32
    %c0_i32_0 = arith.constant 0 : i32
    %c0_i32_1 = arith.constant 0 : i32
    return %c0_i32, %c0_i32_0 : i32, i32
  }
  func.func @transform_6(%arg0: i32) -> (i32, i32) {
    %c0_i32 = arith.constant 0 : i32
    %c0_i32_0 = arith.constant 0 : i32
    %c0_i32_1 = arith.constant 0 : i32
    return %c0_i32, %c0_i32_0 : i32, i32
  }
  func.func @transform_7(%arg0: i32) -> (i32, i32) {
    %c0_i32 = arith.constant 0 : i32
    %c0_i32_0 = arith.constant 0 : i32
    %c0_i32_1 = arith.constant 0 : i32
    return %c0_i32, %c0_i32_0 : i32, i32
  }
  func.func @transform_8(%arg0: i32) -> (i32, i32) {
    %c0_i32 = arith.constant 0 : i32
    %c0_i32_0 = arith.constant 0 : i32
    %c0_i32_1 = arith.constant 0 : i32
    return %c0_i32, %c0_i32_0 : i32, i32
  }
  func.func @transform_9(%arg0: i32) -> (i32, i32) {
    %c0_i32 = arith.constant 0 : i32
    %c0_i32_0 = arith.constant 0 : i32
    %c0_i32_1 = arith.constant 0 : i32
    return %c0_i32, %c0_i32_0 : i32, i32
  }
  func.func @transform_10(%arg0: i32) -> (i32, i32) {
    %c0_i32 = arith.constant 0 : i32
    %c0_i32_0 = arith.constant 0 : i32
    %c0_i32_1 = arith.constant 0 : i32
    return %c0_i32, %c0_i32_0 : i32, i32
  }
  func.func @transform_11(%arg0: i32) -> (i32, i32) {
    %c0_i32 = arith.constant 0 : i32
    %c0_i32_0 = arith.constant 0 : i32
    %c0_i32_1 = arith.constant 0 : i32
    return %c0_i32, %c0_i32_0 : i32, i32
  }
  func.func @transform_12(%arg0: i32) -> (i32, i32) {
    %c0_i32 = arith.constant 0 : i32
    %c0_i32_0 = arith.constant 0 : i32
    %c0_i32_1 = arith.constant 0 : i32
    return %c0_i32, %c0_i32_0 : i32, i32
  }
  func.func @transform_13(%arg0: i32) -> (i32, i32) {
    %c0_i32 = arith.constant 0 : i32
    %c0_i32_0 = arith.constant 0 : i32
    return %arg0, %c0_i32 : i32, i32
  }
  func.func @transform_14(%arg0: i32) -> (i32, i32) {
    %c0_i32 = arith.constant 0 : i32
    %c0_i32_0 = arith.constant 0 : i32
    return %arg0, %c0_i32 : i32, i32
  }
  func.func @transform_15(%arg0: i32) -> (i32, i32, i32) {
    %c0_i32 = arith.constant 0 : i32
    %c0_i32_0 = arith.constant 0 : i32
    %c0_i32_1 = arith.constant 0 : i32
    return %arg0, %c0_i32, %c0_i32_0 : i32, i32, i32
  }
}

</mosaic_0001>

<llo_original>
// kernel: tile.13
$region0: #{tile.13}
  #allocation0 [shape = 's32[1]{0}', space=sflag, size = 0x4, scoped, tag = 'scoped memory for tile.13']
  %s0 = inlined_call_operand.vmem [shape: f32[32], index: 0, kind: input, shape index: {}]
  %s1 = inlined_call_operand.vmem [shape: f32[8,32], index: 1, kind: output, shape index: {}]
  // Predicated region
  $region2: #{tile.13} parent=0 // pred_check
    _
  $region3: #{tile.13} parent=0 // pred_check_branch
    %3 = sbr.rel (0) target = $region5
  $region4: #{tile.13} parent=0 // pred_region
    _
  $region5: #{tile.13} parent=0 // pred_fallthru
    _
  %v4 = vld [vmem:[%s0] ss:$0 sm:$0xff]
  %5 = vst [vmem:[%s1] sm:$0xff] %v4

// kernel: tile.14
$region0: #{tile.14}
  %s0 = inlined_call_operand.vmem [shape: f32[8,32], index: 0, kind: input, shape index: {}]
  %s1 = inlined_call_operand.vmem [shape: f32[1,256], index: 1, kind: output, shape index: {}]
  $region1: #{tile.14} parent=0
    #allocation0 [shape = 'u8[8192]{0}', space=vmem, size = 0x2000, scoped, tag = 'scoped mem for output reshape']
    %s2 = smov 3
    %v3 = vld [vmem:[%s0] ss:$4 sm:%s2]
    %vm4 = vcmask 261120
    %5 = vst.msk [vmem:[#allocation0] ss:$8 sm:$0x3] %vm4, %v3
    %s6 = scalar_lea.vmem %s0, 3
    %s7 = smov 3
    %v8 = vld [vmem:[%s6] ss:$4 sm:%s7]
    %9 = vrot.lane.b32.xlu0 %v8, 96
    %v10 = vpop.permute.xlu0 %9
    %vm11 = vcmask 1048320
    %12 = vst.msk [vmem:[#allocation0] ss:$8 sm:$0x3] %vm11, %v10
    %s13 = scalar_lea.vmem %s0, 2
    %s14 = smov 3
    %v15 = vld [vmem:[%s13] ss:$4 sm:%s14]
    %16 = vrot.lane.b32.xlu0 %v15, 64
    %v17 = vpop.permute.xlu0 %16
    %vm18 = vcmask 785920
    %19 = vst.msk [vmem:[#allocation0] ss:$8 sm:$0x3] %vm18, %v17
    %s20 = scalar_lea.vmem %s0, 1
    %s21 = smov 3
    %v22 = vld [vmem:[%s20] ss:$4 sm:%s21]
    %23 = vrot.lane.b32.xlu0 %v22, 32
    %v24 = vpop.permute.xlu0 %23
    %vm25 = vcmask 523520
    %26 = vst.msk [vmem:[#allocation0] ss:$8 sm:$0x3] %vm25, %v24
    %s28 = ssub.s32 2, 1
    %v29 = vld [vmem:[#allocation0] sm:%s28]
    %s31 = ssub.s32 2, 1
    %32 = vst [vmem:[%s1] sm:%s31] %v29
    %s33 = scalar_lea.vmem [#allocation0], 8
    %v34 = vld [vmem:[%s33] sm:%s28]
    %s36 = ssub.s32 2, 1
    %s37 = scalar_lea.vmem %s1, 1
    %38 = vst [vmem:[%s37] sm:%s36] %v34

// kernel: vqvae_forward.1
$region0: #{vqvae_forward.1}
  #allocation0 [shape = 'u32[]', space=smem, size = 0x4, offset = 0x4, fixed_abs, tag = 'smem constant byte address 0x4 - core index']
  #allocation1 [shape = 'u32[72,128]{1,0:T(1,128)}', space=vmem, size = 0x9000, scoped, tag = 'internal scratch']
  %s0 = inlined_call_operand.vmem [shape: bf16[32,256], index: 0, kind: input, shape index: {}]
  %s1 = inlined_call_operand.vmem [shape: bf16[256,256], index: 1, kind: input, shape index: {}]
  %s2 = inlined_call_operand.vmem [shape: f32[1,256], index: 2, kind: input, shape index: {}]
  %s3 = inlined_call_operand.vmem [shape: bf16[256,128], index: 3, kind: input, shape index: {}]
  %s4 = inlined_call_operand.vmem [shape: f32[1,128], index: 4, kind: input, shape index: {}]
  %s5 = inlined_call_operand.vmem [shape: f32[128,256], index: 5, kind: input, shape index: {}]
  %s6 = inlined_call_operand.vmem [shape: f32[1,256], index: 6, kind: input, shape index: {}]
  %s7 = inlined_call_operand.vmem [shape: f32[1,256], index: 7, kind: input, shape index: {}]
  %s8 = inlined_call_operand.vmem [shape: f32[256,128], index: 8, kind: input, shape index: {}]
  %s9 = inlined_call_operand.vmem [shape: bf16[128,256], index: 9, kind: input, shape index: {}]
  %s10 = inlined_call_operand.vmem [shape: f32[1,256], index: 10, kind: input, shape index: {}]
  %s11 = inlined_call_operand.vmem [shape: bf16[256,256], index: 11, kind: input, shape index: {}]
  %s12 = inlined_call_operand.vmem [shape: f32[1,256], index: 12, kind: input, shape index: {}]
  %s13 = inlined_call_operand.hbm [shape: f32[32,256], index: 13, kind: output, shape index: {0}]
  %s14 = inlined_call_operand.vmem [shape: s32[32,256], index: 14, kind: output, shape index: {1}]
  %s15 = inlined_call_operand.vmem [shape: f32[2,1,128], index: 15, kind: output, shape index: {2}]
  %16 = xla_tuple %s13, %s14, %s15
  %s17 = sld [smem:[#allocation0]]
  $region101: #{vqvae_forward.1} parent=0
    _
  %s19 = ssub.s32 1, %s17
  %s20 = scalar_select 0, %s19, %s17
  $region1: #{vqvae_forward.1} parent=0
    #allocation2 [shape = 'u8[32768]{0}', space=vmem, size = 0x8000, scoped, tag = 'output window, operand 0']
    #allocation3 [shape = 's32[2]{0}', space=sflag, size = 0x8, scoped, tag = 'scoped memory for vqvae_forward.1']
    %21 = vsyncpa [#allocation3], 0
    %s22 = scalar_lea.sflag [#allocation3], 1
    %23 = vsyncpa %s22, 0
    loop: start=0, step=1, limit=4
    $region2: #{vqvae_forward.1} parent=1 // loop_pre_header
      _
    $region3: #{vqvae_forward.1} parent=1 // loop_header
      %s25 = sphi 0, %s29
      %p26 = scmp.ge.s32.totalorder %s25, 4
      %s35 = sphi 0, %s37
      %s38 = sphi 0, %s35
      %s39 = sphi 0, %s38
      %s55 = sphi 0, %s39
      %s59 = sphi 0, %s59
      %s61 = sphi 0, %s59
      %s62 = sphi 0, %s61
      %s76 = sphi 0, %s62
      %s80 = sphi 0, %s80
      %s82 = sphi 0, %s80
      %s83 = sphi 0, %s82
      %s97 = sphi 0, %s83
      %s101 = sphi 0, %s101
      %s103 = sphi 0, %s101
      %s104 = sphi 0, %s103
      %s118 = sphi 0, %s104
      %s122 = sphi 0, %s122
      %s124 = sphi 0, %s122
      %s125 = sphi 0, %s124
      %s139 = sphi 0, %s125
      %s143 = sphi 0, %s143
      %s145 = sphi 0, %s143
      %s146 = sphi 0, %s145
      %s160 = sphi 0, %s146
      %s164 = sphi 0, %s164
      %s166 = sphi 0, %s164
      %s167 = sphi 0, %s166
      %s181 = sphi 0, %s167
      %s185 = sphi 0, %s185
      %s187 = sphi 0, %s185
      %s188 = sphi 0, %s187
      %s202 = sphi 0, %s188
      %s206 = sphi 0, %s206
      %s208 = sphi 0, %s206
      %s209 = sphi 0, %s208
      %s223 = sphi 0, %s209
      %s227 = sphi 0, %s227
      %s229 = sphi 0, %s227
      %s230 = sphi 0, %s229
      %s244 = sphi 0, %s230
      %s248 = sphi 0, %s248
      %s250 = sphi 0, %s248
      %s251 = sphi 0, %s250
      %s265 = sphi 0, %s251
      %s269 = sphi 0, %s269
      %s271 = sphi 0, %s269
      %s272 = sphi 0, %s271
      %s286 = sphi 0, %s272
      %s290 = sphi 0, %s290
      %s292 = sphi 0, %s290
      %s293 = sphi 0, %s292
      %s307 = sphi 0, %s293
      %s313 = sphi 0, %s315
      %s316 = sphi 0, %s313
      %s317 = sphi 0, %s316
      %s333 = sphi 0, %s317
      %s339 = sphi 0, %s341
      %s342 = sphi 0, %s339
      %s343 = sphi 0, %s342
      %s359 = sphi 0, %s343
      %s365 = sphi 0, %s367
      %s368 = sphi 0, %s365
      %s369 = sphi 0, %s368
      %s385 = sphi 0, %s369
    $region4: #{vqvae_forward.1} parent=1 // loop_header_branch
      %28 = sbr.rel (%p26) target = $region8
    $region5: #{vqvae_forward.1} parent=1 // loop_body
      %s30 = ssub.s32 %s25, 1
      %s31 = ssub.s32 %s25, 2
      %s32 = sadd.s32 %s25, 1
      %s33 = ssub.s32 %s25, %s32
      %p34 = scmp.eq.s32.totalorder %s33, 0
      %s36 = sadd.s32 %s35, 1
      %s37 = scalar_select %p34, %s35, %s36
      %p40 = pneg %p34
      %p41 = scmp.eq.s32.totalorder %s25, 1
      %p42 = por %p40, %p41
      %p43 = scmp.ne.s32.totalorder %s35, %s38
      %p44 = scmp.eq.s32.totalorder %s25, 0
      %p45 = por %p43, %p44
      %p46 = scmp.ne.s32.totalorder %s35, %s38
      %p47 = scmp.eq.s32.totalorder %s30, 1
      %p48 = por %p46, %p47
      %p49 = scmp.ne.s32.totalorder %s38, %s39
      %p50 = scmp.eq.s32.totalorder %s30, 0
      %p51 = por %p49, %p50
      %p52 = scmp.ne.s32.totalorder %s38, %s39
      %p53 = scmp.eq.s32.totalorder %s31, 1
      %p54 = por %p52, %p53
      %p56 = scmp.ne.s32.totalorder %s39, %s55
      %p57 = scmp.eq.s32.totalorder %s31, 0
      %p58 = por %p56, %p57
      %s60 = sadd.s32 %s59, 1
      %p63 = scmp.eq.s32.totalorder %s25, 1
      %p64 = scmp.ne.s32.totalorder %s59, %s61
      %p65 = scmp.eq.s32.totalorder %s25, 0
      %p66 = por %p64, %p65
      %p67 = scmp.ne.s32.totalorder %s59, %s61
      %p68 = scmp.eq.s32.totalorder %s30, 1
      %p69 = por %p67, %p68
      %p70 = scmp.ne.s32.totalorder %s61, %s62
      %p71 = scmp.eq.s32.totalorder %s30, 0
      %p72 = por %p70, %p71
      %p73 = scmp.ne.s32.totalorder %s61, %s62
      %p74 = scmp.eq.s32.totalorder %s31, 1
      %p75 = por %p73, %p74
      %p77 = scmp.ne.s32.totalorder %s62, %s76
      %p78 = scmp.eq.s32.totalorder %s31, 0
      %p79 = por %p77, %p78
      %s81 = sadd.s32 %s80, 1
      %p84 = scmp.eq.s32.totalorder %s25, 1
      %p85 = scmp.ne.s32.totalorder %s80, %s82
      %p86 = scmp.eq.s32.totalorder %s25, 0
      %p87 = por %p85, %p86
      %p88 = scmp.ne.s32.totalorder %s80, %s82
      %p89 = scmp.eq.s32.totalorder %s30, 1
      %p90 = por %p88, %p89
      %p91 = scmp.ne.s32.totalorder %s82, %s83
      %p92 = scmp.eq.s32.totalorder %s30, 0
      %p93 = por %p91, %p92
      %p94 = scmp.ne.s32.totalorder %s82, %s83
      %p95 = scmp.eq.s32.totalorder %s31, 1
      %p96 = por %p94, %p95
      %p98 = scmp.ne.s32.totalorder %s83, %s97
      %p99 = scmp.eq.s32.totalorder %s31, 0
      %p100 = por %p98, %p99
      %s102 = sadd.s32 %s101, 1
      %p105 = scmp.eq.s32.totalorder %s25, 1
      %p106 = scmp.ne.s32.totalorder %s101, %s103
      %p107 = scmp.eq.s32.totalorder %s25, 0
      %p108 = por %p106, %p107
      %p109 = scmp.ne.s32.totalorder %s101, %s103
      %p110 = scmp.eq.s32.totalorder %s30, 1
      %p111 = por %p109, %p110
      %p112 = scmp.ne.s32.totalorder %s103, %s104
      %p113 = scmp.eq.s32.totalorder %s30, 0
      %p114 = por %p112, %p113
      %p115 = scmp.ne.s32.totalorder %s103, %s104
      %p116 = scmp.eq.s32.totalorder %s31, 1
      %p117 = por %p115, %p116
      %p119 = scmp.ne.s32.totalorder %s104, %s118
      %p120 = scmp.eq.s32.totalorder %s31, 0
      %p121 = por %p119, %p120
      %s123 = sadd.s32 %s122, 1
      %p126 = scmp.eq.s32.totalorder %s25, 1
      %p127 = scmp.ne.s32.totalorder %s122, %s124
      %p128 = scmp.eq.s32.totalorder %s25, 0
      %p129 = por %p127, %p128
      %p130 = scmp.ne.s32.totalorder %s122, %s124
      %p131 = scmp.eq.s32.totalorder %s30, 1
      %p132 = por %p130, %p131
      %p133 = scmp.ne.s32.totalorder %s124, %s125
      %p134 = scmp.eq.s32.totalorder %s30, 0
      %p135 = por %p133, %p134
      %p136 = scmp.ne.s32.totalorder %s124, %s125
      %p137 = scmp.eq.s32.totalorder %s31, 1
      %p138 = por %p136, %p137
      %p140 = scmp.ne.s32.totalorder %s125, %s139
      %p141 = scmp.eq.s32.totalorder %s31, 0
      %p142 = por %p140, %p141
      %s144 = sadd.s32 %s143, 1
      %p147 = scmp.eq.s32.totalorder %s25, 1
      %p148 = scmp.ne.s32.totalorder %s143, %s145
      %p149 = scmp.eq.s32.totalorder %s25, 0
      %p150 = por %p148, %p149
      %p151 = scmp.ne.s32.totalorder %s143, %s145
      %p152 = scmp.eq.s32.totalorder %s30, 1
      %p153 = por %p151, %p152
      %p154 = scmp.ne.s32.totalorder %s145, %s146
      %p155 = scmp.eq.s32.totalorder %s30, 0
      %p156 = por %p154, %p155
      %p157 = scmp.ne.s32.totalorder %s145, %s146
      %p158 = scmp.eq.s32.totalorder %s31, 1
      %p159 = por %p157, %p158
      %p161 = scmp.ne.s32.totalorder %s146, %s160
      %p162 = scmp.eq.s32.totalorder %s31, 0
      %p163 = por %p161, %p162
      %s165 = sadd.s32 %s164, 1
      %p168 = scmp.eq.s32.totalorder %s25, 1
      %p169 = scmp.ne.s32.totalorder %s164, %s166
      %p170 = scmp.eq.s32.totalorder %s25, 0
      %p171 = por %p169, %p170
      %p172 = scmp.ne.s32.totalorder %s164, %s166
      %p173 = scmp.eq.s32.totalorder %s30, 1
      %p174 = por %p172, %p173
      %p175 = scmp.ne.s32.totalorder %s166, %s167
      %p176 = scmp.eq.s32.totalorder %s30, 0
      %p177 = por %p175, %p176
      %p178 = scmp.ne.s32.totalorder %s166, %s167
      %p179 = scmp.eq.s32.totalorder %s31, 1
      %p180 = por %p178, %p179
      %p182 = scmp.ne.s32.totalorder %s167, %s181
      %p183 = scmp.eq.s32.totalorder %s31, 0
      %p184 = por %p182, %p183
      %s186 = sadd.s32 %s185, 1
      %p189 = scmp.eq.s32.totalorder %s25, 1
      %p190 = scmp.ne.s32.totalorder %s185, %s187
      %p191 = scmp.eq.s32.totalorder %s25, 0
      %p192 = por %p190, %p191
      %p193 = scmp.ne.s32.totalorder %s185, %s187
      %p194 = scmp.eq.s32.totalorder %s30, 1
      %p195 = por %p193, %p194
      %p196 = scmp.ne.s32.totalorder %s187, %s188
      %p197 = scmp.eq.s32.totalorder %s30, 0
      %p198 = por %p196, %p197
      %p199 = scmp.ne.s32.totalorder %s187, %s188
      %p200 = scmp.eq.s32.totalorder %s31, 1
      %p201 = por %p199, %p200
      %p203 = scmp.ne.s32.totalorder %s188, %s202
      %p204 = scmp.eq.s32.totalorder %s31, 0
      %p205 = por %p203, %p204
      %s207 = sadd.s32 %s206, 1
      %p210 = scmp.eq.s32.totalorder %s25, 1
      %p211 = scmp.ne.s32.totalorder %s206, %s208
      %p212 = scmp.eq.s32.totalorder %s25, 0
      %p213 = por %p211, %p212
      %p214 = scmp.ne.s32.totalorder %s206, %s208
      %p215 = scmp.eq.s32.totalorder %s30, 1
      %p216 = por %p214, %p215
      %p217 = scmp.ne.s32.totalorder %s208, %s209
      %p218 = scmp.eq.s32.totalorder %s30, 0
      %p219 = por %p217, %p218
      %p220 = scmp.ne.s32.totalorder %s208, %s209
      %p221 = scmp.eq.s32.totalorder %s31, 1
      %p222 = por %p220, %p221
      %p224 = scmp.ne.s32.totalorder %s209, %s223
      %p225 = scmp.eq.s32.totalorder %s31, 0
      %p226 = por %p224, %p225
      %s228 = sadd.s32 %s227, 1
      %p231 = scmp.eq.s32.totalorder %s25, 1
      %p232 = scmp.ne.s32.totalorder %s227, %s229
      %p233 = scmp.eq.s32.totalorder %s25, 0
      %p234 = por %p232, %p233
      %p235 = scmp.ne.s32.totalorder %s227, %s229
      %p236 = scmp.eq.s32.totalorder %s30, 1
      %p237 = por %p235, %p236
      %p238 = scmp.ne.s32.totalorder %s229, %s230
      %p239 = scmp.eq.s32.totalorder %s30, 0
      %p240 = por %p238, %p239
      %p241 = scmp.ne.s32.totalorder %s229, %s230
      %p242 = scmp.eq.s32.totalorder %s31, 1
      %p243 = por %p241, %p242
      %p245 = scmp.ne.s32.totalorder %s230, %s244
      %p246 = scmp.eq.s32.totalorder %s31, 0
      %p247 = por %p245, %p246
      %s249 = sadd.s32 %s248, 1
      %p252 = scmp.eq.s32.totalorder %s25, 1
      %p253 = scmp.ne.s32.totalorder %s248, %s250
      %p254 = scmp.eq.s32.totalorder %s25, 0
      %p255 = por %p253, %p254
      %p256 = scmp.ne.s32.totalorder %s248, %s250
      %p257 = scmp.eq.s32.totalorder %s30, 1
      %p258 = por %p256, %p257
      %p259 = scmp.ne.s32.totalorder %s250, %s251
      %p260 = scmp.eq.s32.totalorder %s30, 0
      %p261 = por %p259, %p260
      %p262 = scmp.ne.s32.totalorder %s250, %s251
      %p263 = scmp.eq.s32.totalorder %s31, 1
      %p264 = por %p262, %p263
      %p266 = scmp.ne.s32.totalorder %s251, %s265
      %p267 = scmp.eq.s32.totalorder %s31, 0
      %p268 = por %p266, %p267
      %s270 = sadd.s32 %s269, 1
      %p273 = scmp.eq.s32.totalorder %s25, 1
      %p274 = scmp.ne.s32.totalorder %s269, %s271
      %p275 = scmp.eq.s32.totalorder %s25, 0
      %p276 = por %p274, %p275
      %p277 = scmp.ne.s32.totalorder %s269, %s271
      %p278 = scmp.eq.s32.totalorder %s30, 1
      %p279 = por %p277, %p278
      %p280 = scmp.ne.s32.totalorder %s271, %s272
      %p281 = scmp.eq.s32.totalorder %s30, 0
      %p282 = por %p280, %p281
      %p283 = scmp.ne.s32.totalorder %s271, %s272
      %p284 = scmp.eq.s32.totalorder %s31, 1
      %p285 = por %p283, %p284
      %p287 = scmp.ne.s32.totalorder %s272, %s286
      %p288 = scmp.eq.s32.totalorder %s31, 0
      %p289 = por %p287, %p288
      %s291 = sadd.s32 %s290, 1
      %p294 = scmp.eq.s32.totalorder %s25, 1
      %p295 = scmp.ne.s32.totalorder %s290, %s292
      %p296 = scmp.eq.s32.totalorder %s25, 0
      %p297 = por %p295, %p296
      %p298 = scmp.ne.s32.totalorder %s290, %s292
      %p299 = scmp.eq.s32.totalorder %s30, 1
      %p300 = por %p298, %p299
      %p301 = scmp.ne.s32.totalorder %s292, %s293
      %p302 = scmp.eq.s32.totalorder %s30, 0
      %p303 = por %p301, %p302
      %p304 = scmp.ne.s32.totalorder %s292, %s293
      %p305 = scmp.eq.s32.totalorder %s31, 1
      %p306 = por %p304, %p305
      %p308 = scmp.ne.s32.totalorder %s293, %s307
      %p309 = scmp.eq.s32.totalorder %s31, 0
      %p310 = por %p308, %p309
      %s311 = ssub.s32 %s25, %s32
      %p312 = scmp.eq.s32.totalorder %s311, 0
      %s314 = sadd.s32 %s313, 1
      %s315 = scalar_select %p312, %s313, %s314
      %p318 = pneg %p312
      %p319 = scmp.eq.s32.totalorder %s25, 1
      %p320 = por %p318, %p319
      %p321 = scmp.ne.s32.totalorder %s313, %s316
      %p322 = scmp.eq.s32.totalorder %s25, 0
      %p323 = por %p321, %p322
      %p324 = scmp.ne.s32.totalorder %s313, %s316
      %p325 = scmp.eq.s32.totalorder %s30, 1
      %p326 = por %p324, %p325
      %p327 = scmp.ne.s32.totalorder %s316, %s317
      %p328 = scmp.eq.s32.totalorder %s30, 0
      %p329 = por %p327, %p328
      %p330 = scmp.ne.s32.totalorder %s316, %s317
      %p331 = scmp.eq.s32.totalorder %s31, 1
      %p332 = por %p330, %p331
      %p334 = scmp.ne.s32.totalorder %s317, %s333
      %p335 = scmp.eq.s32.totalorder %s31, 0
      %p336 = por %p334, %p335
      %s337 = ssub.s32 %s25, %s32
      %p338 = scmp.eq.s32.totalorder %s337, 0
      %s340 = sadd.s32 %s339, 1
      %s341 = scalar_select %p338, %s339, %s340
      %p344 = pneg %p338
      %p345 = scmp.eq.s32.totalorder %s25, 1
      %p346 = por %p344, %p345
      %p347 = scmp.ne.s32.totalorder %s339, %s342
      %p348 = scmp.eq.s32.totalorder %s25, 0
      %p349 = por %p347, %p348
      %p350 = scmp.ne.s32.totalorder %s339, %s342
      %p351 = scmp.eq.s32.totalorder %s30, 1
      %p352 = por %p350, %p351
      %p353 = scmp.ne.s32.totalorder %s342, %s343
      %p354 = scmp.eq.s32.totalorder %s30, 0
      %p355 = por %p353, %p354
      %p356 = scmp.ne.s32.totalorder %s342, %s343
      %p357 = scmp.eq.s32.totalorder %s31, 1
      %p358 = por %p356, %p357
      %p360 = scmp.ne.s32.totalorder %s343, %s359
      %p361 = scmp.eq.s32.totalorder %s31, 0
      %p362 = por %p360, %p361
      %s363 = ssub.s32 %s25, %s32
      %p364 = scmp.eq.s32.totalorder %s363, 0
      %s366 = sadd.s32 %s365, 1
      %s367 = scalar_select %p364, %s365, %s366
      %p370 = pneg %p364
      %p371 = scmp.eq.s32.totalorder %s25, 1
      %p372 = por %p370, %p371
      %p373 = scmp.ne.s32.totalorder %s365, %s368
      %p374 = scmp.eq.s32.totalorder %s25, 0
      %p375 = por %p373, %p374
      %p376 = scmp.ne.s32.totalorder %s365, %s368
      %p377 = scmp.eq.s32.totalorder %s30, 1
      %p378 = por %p376, %p377
      %p379 = scmp.ne.s32.totalorder %s368, %s369
      %p380 = scmp.eq.s32.totalorder %s30, 0
      %p381 = por %p379, %p380
      %p382 = scmp.ne.s32.totalorder %s368, %s369
      %p383 = scmp.eq.s32.totalorder %s31, 1
      %p384 = por %p382, %p383
      %p386 = scmp.ne.s32.totalorder %s369, %s385
      %p387 = scmp.eq.s32.totalorder %s31, 0
      %p388 = por %p386, %p387
      %p389 = scmp.le.s32.totalorder 1, %s25
      %p390 = scmp.lt.s32.totalorder %s25, 3
      %p391 = pnand %p389, %p390
      %p392 = pneg %p391
      // Predicated region
      $region9: #{vqvae_forward.1} parent=5 // pred_check
        _
      $region10: #{vqvae_forward.1} parent=5 // pred_check_branch
        %394 = sbr.rel (%p391) target = $region12
      $region11: #{vqvae_forward.1} parent=5 // pred_region
        %s395 = ssub.s32 %s25, 1
        // Predicated region
        $region13: #{vqvae_forward.1} parent=11 // pred_check
          %p396 = pneg %p72
        $region14: #{vqvae_forward.1} parent=11 // pred_check_branch
          %398 = sbr.rel (%p396) target = $region16
        $region15: #{vqvae_forward.1} parent=11 // pred_region
          _
        $region16: #{vqvae_forward.1} parent=11 // pred_fallthru
          _
        // Predicated region
        $region17: #{vqvae_forward.1} parent=11 // pred_check
          %p399 = pneg %p93
        $region18: #{vqvae_forward.1} parent=11 // pred_check_branch
          %401 = sbr.rel (%p399) target = $region20
        $region19: #{vqvae_forward.1} parent=11 // pred_region
          _
        $region20: #{vqvae_forward.1} parent=11 // pred_fallthru
          _
        // Predicated region
        $region21: #{vqvae_forward.1} parent=11 // pred_check
          %p402 = pneg %p114
        $region22: #{vqvae_forward.1} parent=11 // pred_check_branch
          %404 = sbr.rel (%p402) target = $region24
        $region23: #{vqvae_forward.1} parent=11 // pred_region
          _
        $region24: #{vqvae_forward.1} parent=11 // pred_fallthru
          _
        // Predicated region
        $region25: #{vqvae_forward.1} parent=11 // pred_check
          %p405 = pneg %p135
        $region26: #{vqvae_forward.1} parent=11 // pred_check_branch
          %407 = sbr.rel (%p405) target = $region28
        $region27: #{vqvae_forward.1} parent=11 // pred_region
          _
        $region28: #{vqvae_forward.1} parent=11 // pred_fallthru
          _
        // Predicated region
        $region29: #{vqvae_forward.1} parent=11 // pred_check
          %p408 = pneg %p156
        $region30: #{vqvae_forward.1} parent=11 // pred_check_branch
          %410 = sbr.rel (%p408) target = $region32
        $region31: #{vqvae_forward.1} parent=11 // pred_region
          _
        $region32: #{vqvae_forward.1} parent=11 // pred_fallthru
          _
        // Predicated region
        $region33: #{vqvae_forward.1} parent=11 // pred_check
          %p411 = pneg %p177
        $region34: #{vqvae_forward.1} parent=11 // pred_check_branch
          %413 = sbr.rel (%p411) target = $region36
        $region35: #{vqvae_forward.1} parent=11 // pred_region
          _
        $region36: #{vqvae_forward.1} parent=11 // pred_fallthru
          _
        // Predicated region
        $region37: #{vqvae_forward.1} parent=11 // pred_check
          %p414 = pneg %p198
        $region38: #{vqvae_forward.1} parent=11 // pred_check_branch
          %416 = sbr.rel (%p414) target = $region40
        $region39: #{vqvae_forward.1} parent=11 // pred_region
          _
        $region40: #{vqvae_forward.1} parent=11 // pred_fallthru
          _
        // Predicated region
        $region41: #{vqvae_forward.1} parent=11 // pred_check
          %p417 = pneg %p219
        $region42: #{vqvae_forward.1} parent=11 // pred_check_branch
          %419 = sbr.rel (%p417) target = $region44
        $region43: #{vqvae_forward.1} parent=11 // pred_region
          _
        $region44: #{vqvae_forward.1} parent=11 // pred_fallthru
          _
        // Predicated region
        $region45: #{vqvae_forward.1} parent=11 // pred_check
          %p420 = pneg %p240
        $region46: #{vqvae_forward.1} parent=11 // pred_check_branch
          %422 = sbr.rel (%p420) target = $region48
        $region47: #{vqvae_forward.1} parent=11 // pred_region
          _
        $region48: #{vqvae_forward.1} parent=11 // pred_fallthru
          _
        // Predicated region
        $region49: #{vqvae_forward.1} parent=11 // pred_check
          %p423 = pneg %p261
        $region50: #{vqvae_forward.1} parent=11 // pred_check_branch
          %425 = sbr.rel (%p423) target = $region52
        $region51: #{vqvae_forward.1} parent=11 // pred_region
          _
        $region52: #{vqvae_forward.1} parent=11 // pred_fallthru
          _
        // Predicated region
        $region53: #{vqvae_forward.1} parent=11 // pred_check
          %p426 = pneg %p282
        $region54: #{vqvae_forward.1} parent=11 // pred_check_branch
          %428 = sbr.rel (%p426) target = $region56
        $region55: #{vqvae_forward.1} parent=11 // pred_region
          _
        $region56: #{vqvae_forward.1} parent=11 // pred_fallthru
          _
        // Predicated region
        $region57: #{vqvae_forward.1} parent=11 // pred_check
          %p429 = pneg %p303
        $region58: #{vqvae_forward.1} parent=11 // pred_check_branch
          %431 = sbr.rel (%p429) target = $region60
        $region59: #{vqvae_forward.1} parent=11 // pred_region
          _
        $region60: #{vqvae_forward.1} parent=11 // pred_fallthru
          _
      $region12: #{vqvae_forward.1} parent=5 // pred_fallthru
        _
      %p432 = scmp.lt.s32.totalorder %s25, 2
      // Predicated region
      $region61: #{vqvae_forward.1} parent=5 // pred_check
        %p433 = pneg %p432
      $region62: #{vqvae_forward.1} parent=5 // pred_check_branch
        %435 = sbr.rel (%p433) target = $region64
      $region63: #{vqvae_forward.1} parent=5 // pred_region
        // Predicated region
        $region65: #{vqvae_forward.1} parent=63 // pred_check
          %p436 = pneg %p45
        $region66: #{vqvae_forward.1} parent=63 // pred_check_branch
          %438 = sbr.rel (%p436) target = $region68
        $region67: #{vqvae_forward.1} parent=63 // pred_region
          %s439 = smul.u32 2, %s25
          %p440 = scmp.lt.s32.totalorder %s439, 3
          %s441 = scalar_select %p440, %s439, 3
          %s442 = smul.addr %s441, 2
          %s443 = smul.addr %s442, 4
          %s444 = scalar_lea.vmem %s0, %s443
          %s445 = smul.u32 2, %s25
        $region68: #{vqvae_forward.1} parent=63 // pred_fallthru
          _
      $region64: #{vqvae_forward.1} parent=5 // pred_fallthru
        _
      %p446 = scmp.le.s32.totalorder 1, %s25
      %p447 = scmp.lt.s32.totalorder %s25, 3
      %p448 = pnand %p446, %p447
      %p449 = pneg %p448
      // Predicated region
      $region69: #{vqvae_forward.1} parent=5 // pred_check
        _
      $region70: #{vqvae_forward.1} parent=5 // pred_check_branch
        %451 = sbr.rel (%p448) target = $region72
      $region71: #{vqvae_forward.1} parent=5 // pred_region
        %s452 = ssub.s32 %s25, 1
        %s453 = smul.u32 2, %s30
        %p454 = scmp.lt.s32.totalorder %s453, 3
        %s455 = scalar_select %p454, %s453, 3
        %s456 = smul.addr %s455, 2
        %s457 = smul.addr %s456, 4
        %s458 = scalar_lea.vmem %s0, %s457
        %p459 = pneg %p51
        %p460 = pneg %p48
        %p461 = pneg %p72
        %p462 = pneg %p69
        %p463 = pneg %p93
        %p464 = pneg %p90
        %p465 = pneg %p114
        %p466 = pneg %p111
        %p467 = pneg %p135
        %p468 = pneg %p132
        %p469 = pneg %p156
        %p470 = pneg %p153
        %p471 = pneg %p177
        %p472 = pneg %p174
        %p473 = pneg %p198
        %p474 = pneg %p195
        %p475 = pneg %p219
        %p476 = pneg %p216
        %p477 = pneg %p240
        %p478 = pneg %p237
        %p479 = pneg %p261
        %p480 = pneg %p258
        %p481 = pneg %p282
        %p482 = pneg %p279
        %p483 = pneg %p303
        %p484 = pneg %p300
        %p485 = pneg %p329
        %p486 = pneg %p326
        %s487 = sand.u32 %s316, 1
        %s488 = scalar_lea.sflag [#allocation3], %s487
        %s489 = sand.u32 %s316, 1
        %s490 = smul.addr %s489, 32
        %s491 = scalar_lea.vmem [#allocation2], %s490
        %p492 = pneg %p355
        %p493 = pneg %p352
        %s494 = smul.u32 2, %s30
        %p495 = scmp.lt.s32.totalorder %s494, 3
        %s496 = scalar_select %p495, %s494, 3
        %s497 = smul.addr %s496, 2
        %s498 = smul.addr %s497, 8
        %s499 = scalar_lea.vmem %s14, %s498
        %p500 = pneg %p381
        %p501 = pneg %p378
        %p502 = scmp.lt.s32.totalorder %s30, 1
        %s503 = scalar_select %p502, %s30, 1
        %s504 = scalar_lea.vmem %s15, %s503
        %s505 = smul.u32 2, %s30
        %p506 = scmp.lt.s32.totalorder %s505, 3
        %s507 = scalar_select %p506, %s505, 3
        %s508 = smul.addr %s507, 2
        %s509 = smul.addr %s508, 4
        %s510 = scalar_lea.vmem %s0, %s509
        %s511 = smul.u32 2, %s30
        %s512 = smul.u32 2, %s30
        %s513 = smul.u32 2, %s30
        %p514 = scmp.lt.s32.totalorder %s513, 3
        %s515 = scalar_select %p514, %s513, 3
        %s516 = smul.addr %s515, 2
        %s517 = smul.addr %s516, 8
        %s518 = scalar_lea.vmem %s14, %s517
        %s519 = smul.u32 2, %s30
        %p520 = scmp.lt.s32.totalorder %s30, 1
        %s521 = scalar_select %p520, %s30, 1
        %s522 = scalar_lea.vmem %s15, %s521
        %v523 = vld [vmem:[%s510] sm:$0xff]
        %v524 = vld [vmem:[%s510 + $0x8] sm:$0xff]
        %v525 = vld [vmem:[%s1] sm:$0xff]
        %v526 = vld [vmem:[%s1 + $0x8] sm:$0xff]
        %v527 = vld [vmem:[%s1 + $0x10] sm:$0xff]
        %v528 = vld [vmem:[%s1 + $0x18] sm:$0xff]
        %v529 = vld [vmem:[%s1 + $0x20] sm:$0xff]
        %v530 = vld [vmem:[%s1 + $0x28] sm:$0xff]
        %v531 = vld [vmem:[%s1 + $0x30] sm:$0xff]
        %v532 = vld [vmem:[%s1 + $0x38] sm:$0xff]
        %v533 = vld [vmem:[%s1 + $0x40] sm:$0xff]
        %v534 = vld [vmem:[%s1 + $0x48] sm:$0xff]
        %v535 = vld [vmem:[%s1 + $0x50] sm:$0xff]
        %v536 = vld [vmem:[%s1 + $0x58] sm:$0xff]
        %v537 = vld [vmem:[%s1 + $0x60] sm:$0xff]
        %v538 = vld [vmem:[%s1 + $0x68] sm:$0xff]
        %v539 = vld [vmem:[%s1 + $0x70] sm:$0xff]
        %v540 = vld [vmem:[%s1 + $0x78] sm:$0xff]
        %v541 = vld [vmem:[%s1 + $0x80] sm:$0xff]
        %v542 = vld [vmem:[%s1 + $0x88] sm:$0xff]
        %v543 = vld [vmem:[%s1 + $0x90] sm:$0xff]
        %v544 = vld [vmem:[%s1 + $0x98] sm:$0xff]
        %v545 = vld [vmem:[%s1 + $0xa0] sm:$0xff]
        %v546 = vld [vmem:[%s1 + $0xa8] sm:$0xff]
        %v547 = vld [vmem:[%s1 + $0xb0] sm:$0xff]
        %v548 = vld [vmem:[%s1 + $0xb8] sm:$0xff]
        %v549 = vld [vmem:[%s1 + $0xc0] sm:$0xff]
        %v550 = vld [vmem:[%s1 + $0xc8] sm:$0xff]
        %v551 = vld [vmem:[%s1 + $0xd0] sm:$0xff]
        %v552 = vld [vmem:[%s1 + $0xd8] sm:$0xff]
        %v553 = vld [vmem:[%s1 + $0xe0] sm:$0xff]
        %v554 = vld [vmem:[%s1 + $0xe8] sm:$0xff]
        %v555 = vld [vmem:[%s1 + $0xf0] sm:$0xff]
        %v556 = vld [vmem:[%s1 + $0xf8] sm:$0xff]
        %v557 = vld [vmem:[%s2] sm:$0x3]
        %v559 = vperm.slane %v557, 0
        %v560 = vperm.slane %v557, 1
        %v565 = vunpack.c.l.b16 %v523
        %v566 = vunpack.c.h.b16 %v523
        %v567 = vunpack.c.l.b16 %v524
        %v568 = vunpack.c.h.b16 %v524
        %v569 = vpack.c.b16 %v567, %v565
        %v570 = vpack.c.b16 %v568, %v566
        %v605 = vunpack.c.l.b16 %v525
        %v606 = vunpack.c.h.b16 %v525
        %v607 = vunpack.c.l.b16 %v526
        %v608 = vunpack.c.h.b16 %v526
        %v609 = vunpack.c.l.b16 %v527
        %v610 = vunpack.c.h.b16 %v527
        %v611 = vunpack.c.l.b16 %v528
        %v612 = vunpack.c.h.b16 %v528
        %v613 = vunpack.c.l.b16 %v529
        %v614 = vunpack.c.h.b16 %v529
        %v615 = vunpack.c.l.b16 %v530
        %v616 = vunpack.c.h.b16 %v530
        %v617 = vunpack.c.l.b16 %v531
        %v618 = vunpack.c.h.b16 %v531
        %v619 = vunpack.c.l.b16 %v532
        %v620 = vunpack.c.h.b16 %v532
        %v621 = vunpack.c.l.b16 %v533
        %v622 = vunpack.c.h.b16 %v533
        %v623 = vunpack.c.l.b16 %v534
        %v624 = vunpack.c.h.b16 %v534
        %v625 = vunpack.c.l.b16 %v535
        %v626 = vunpack.c.h.b16 %v535
        %v627 = vunpack.c.l.b16 %v536
        %v628 = vunpack.c.h.b16 %v536
        %v629 = vunpack.c.l.b16 %v537
        %v630 = vunpack.c.h.b16 %v537
        %v631 = vunpack.c.l.b16 %v538
        %v632 = vunpack.c.h.b16 %v538
        %v633 = vunpack.c.l.b16 %v539
        %v634 = vunpack.c.h.b16 %v539
        %v635 = vunpack.c.l.b16 %v540
        %v636 = vunpack.c.h.b16 %v540
        %v637 = vunpack.c.l.b16 %v541
        %v638 = vunpack.c.h.b16 %v541
        %v639 = vunpack.c.l.b16 %v542
        %v640 = vunpack.c.h.b16 %v542
        %v641 = vunpack.c.l.b16 %v543
        %v642 = vunpack.c.h.b16 %v543
        %v643 = vunpack.c.l.b16 %v544
        %v644 = vunpack.c.h.b16 %v544
        %v645 = vunpack.c.l.b16 %v545
        %v646 = vunpack.c.h.b16 %v545
        %v647 = vunpack.c.l.b16 %v546
        %v648 = vunpack.c.h.b16 %v546
        %v649 = vunpack.c.l.b16 %v547
        %v650 = vunpack.c.h.b16 %v547
        %v651 = vunpack.c.l.b16 %v548
        %v652 = vunpack.c.h.b16 %v548
        %v653 = vunpack.c.l.b16 %v549
        %v654 = vunpack.c.h.b16 %v549
        %v655 = vunpack.c.l.b16 %v550
        %v656 = vunpack.c.h.b16 %v550
        %v657 = vunpack.c.l.b16 %v551
        %v658 = vunpack.c.h.b16 %v551
        %v659 = vunpack.c.l.b16 %v552
        %v660 = vunpack.c.h.b16 %v552
        %v661 = vunpack.c.l.b16 %v553
        %v662 = vunpack.c.h.b16 %v553
        %v663 = vunpack.c.l.b16 %v554
        %v664 = vunpack.c.h.b16 %v554
        %v665 = vunpack.c.l.b16 %v555
        %v666 = vunpack.c.h.b16 %v555
        %v667 = vunpack.c.l.b16 %v556
        %v668 = vunpack.c.h.b16 %v556
        %v669 = vpack.c.b16 %v607, %v605
        %v670 = vpack.c.b16 %v608, %v606
        %v671 = vpack.c.b16 %v611, %v609
        %v672 = vpack.c.b16 %v612, %v610
        %v673 = vpack.c.b16 %v615, %v613
        %v674 = vpack.c.b16 %v616, %v614
        %v675 = vpack.c.b16 %v619, %v617
        %v676 = vpack.c.b16 %v620, %v618
        %v677 = vpack.c.b16 %v623, %v621
        %v678 = vpack.c.b16 %v624, %v622
        %v679 = vpack.c.b16 %v627, %v625
        %v680 = vpack.c.b16 %v628, %v626
        %v681 = vpack.c.b16 %v631, %v629
        %v682 = vpack.c.b16 %v632, %v630
        %v683 = vpack.c.b16 %v635, %v633
        %v684 = vpack.c.b16 %v636, %v634
        %v685 = vpack.c.b16 %v639, %v637
        %v686 = vpack.c.b16 %v640, %v638
        %v687 = vpack.c.b16 %v643, %v641
        %v688 = vpack.c.b16 %v644, %v642
        %v689 = vpack.c.b16 %v647, %v645
        %v690 = vpack.c.b16 %v648, %v646
        %v691 = vpack.c.b16 %v651, %v649
        %v692 = vpack.c.b16 %v652, %v650
        %v693 = vpack.c.b16 %v655, %v653
        %v694 = vpack.c.b16 %v656, %v654
        %v695 = vpack.c.b16 %v659, %v657
        %v696 = vpack.c.b16 %v660, %v658
        %v697 = vpack.c.b16 %v663, %v661
        %v698 = vpack.c.b16 %v664, %v662
        %v699 = vpack.c.b16 %v667, %v665
        %v700 = vpack.c.b16 %v668, %v666
        %733 = vmatpush.bf16.msra.mxu0 %v683
        %734 = vmatpush.bf16.msra.mxu0 %v681
        %735 = vmatpush.bf16.msra.mxu0 %v679
        %736 = vmatpush.bf16.msra.mxu0 %v677
        %737 = vmatpush.bf16.msra.mxu0 %v675
        %738 = vmatpush.bf16.msra.mxu0 %v673
        %739 = vmatpush.bf16.msra.mxu0 %v671
        %740 = vmatpush.bf16.msra.mxu0 %v669
        %741 = vmatmul.bf16.gmra.mxu0 %v569
        %v742 = vpop.f32.mrf.mxu0
        %v743 = vadd.f32 %v559, %v742
        %v744 = vpop.f32.mrf.mxu0
        %v745 = vadd.f32 %v559, %v744
        %746 = vdwg.mxu0
        %747 = vmatpush.bf16.msra.mxu0 %v699
        %748 = vmatpush.bf16.msra.mxu0 %v697
        %749 = vmatpush.bf16.msra.mxu0 %v695
        %750 = vmatpush.bf16.msra.mxu0 %v693
        %751 = vmatpush.bf16.msra.mxu0 %v691
        %752 = vmatpush.bf16.msra.mxu0 %v689
        %753 = vmatpush.bf16.msra.mxu0 %v687
        %754 = vmatpush.bf16.msra.mxu0 %v685
        %755 = vmatmul.bf16.gmra.mxu0 %v570
        %v756 = vpop.f32.mrf.mxu0
        %v757 = vadd.f32 %v743, %v756
        %v758 = vpop.f32.mrf.mxu0
        %v759 = vadd.f32 %v745, %v758
        %760 = vdwg.mxu0
        %761 = vmatpush.bf16.msra.mxu0 %v684
        %762 = vmatpush.bf16.msra.mxu0 %v682
        %763 = vmatpush.bf16.msra.mxu0 %v680
        %764 = vmatpush.bf16.msra.mxu0 %v678
        %765 = vmatpush.bf16.msra.mxu0 %v676
        %766 = vmatpush.bf16.msra.mxu0 %v674
        %767 = vmatpush.bf16.msra.mxu0 %v672
        %768 = vmatpush.bf16.msra.mxu0 %v670
        %769 = vmatmul.bf16.gmra.mxu0 %v569
        %v770 = vpop.f32.mrf.mxu0
        %v771 = vadd.f32 %v560, %v770
        %v772 = vpop.f32.mrf.mxu0
        %v773 = vadd.f32 %v560, %v772
        %774 = vdwg.mxu0
        %775 = vmatpush.bf16.msra.mxu0 %v700
        %776 = vmatpush.bf16.msra.mxu0 %v698
        %777 = vmatpush.bf16.msra.mxu0 %v696
        %778 = vmatpush.bf16.msra.mxu0 %v694
        %779 = vmatpush.bf16.msra.mxu0 %v692
        %780 = vmatpush.bf16.msra.mxu0 %v690
        %781 = vmatpush.bf16.msra.mxu0 %v688
        %782 = vmatpush.bf16.msra.mxu0 %v686
        %783 = vmatmul.bf16.gmra.mxu0 %v570
        %v784 = vpop.f32.mrf.mxu0
        %v785 = vadd.f32 %v771, %v784
        %v786 = vpop.f32.mrf.mxu0
        %v787 = vadd.f32 %v773, %v786
        %788 = vdwg.mxu0
        %v789 = vmax.f32 %v757, 0.0
        %v790 = vmax.f32 %v785, 0.0
        %v791 = vmax.f32 %v759, 0.0
        %v792 = vmax.f32 %v787, 0.0
        %v793 = vpack.c.bf16 %v791, %v789
        %v794 = vpack.c.bf16 %v792, %v790
        %v795 = vld [vmem:[%s3] sm:$0xf]
        %v796 = vld [vmem:[%s3 + $0x4] sm:$0xf]
        %v797 = vld [vmem:[%s3 + $0x8] sm:$0xf]
        %v798 = vld [vmem:[%s3 + $0xc] sm:$0xf]
        %v799 = vld [vmem:[%s3 + $0x10] sm:$0xf]
        %v800 = vld [vmem:[%s3 + $0x14] sm:$0xf]
        %v801 = vld [vmem:[%s3 + $0x18] sm:$0xf]
        %v802 = vld [vmem:[%s3 + $0x1c] sm:$0xf]
        %v803 = vld [vmem:[%s3 + $0x20] sm:$0xf]
        %v804 = vld [vmem:[%s3 + $0x24] sm:$0xf]
        %v805 = vld [vmem:[%s3 + $0x28] sm:$0xf]
        %v806 = vld [vmem:[%s3 + $0x2c] sm:$0xf]
        %v807 = vld [vmem:[%s3 + $0x30] sm:$0xf]
        %v808 = vld [vmem:[%s3 + $0x34] sm:$0xf]
        %v809 = vld [vmem:[%s3 + $0x38] sm:$0xf]
        %v810 = vld [vmem:[%s3 + $0x3c] sm:$0xf]
        %v811 = vld [vmem:[%s3 + $0x40] sm:$0xf]
        %v812 = vld [vmem:[%s3 + $0x44] sm:$0xf]
        %v813 = vld [vmem:[%s3 + $0x48] sm:$0xf]
        %v814 = vld [vmem:[%s3 + $0x4c] sm:$0xf]
        %v815 = vld [vmem:[%s3 + $0x50] sm:$0xf]
        %v816 = vld [vmem:[%s3 + $0x54] sm:$0xf]
        %v817 = vld [vmem:[%s3 + $0x58] sm:$0xf]
        %v818 = vld [vmem:[%s3 + $0x5c] sm:$0xf]
        %v819 = vld [vmem:[%s3 + $0x60] sm:$0xf]
        %v820 = vld [vmem:[%s3 + $0x64] sm:$0xf]
        %v821 = vld [vmem:[%s3 + $0x68] sm:$0xf]
        %v822 = vld [vmem:[%s3 + $0x6c] sm:$0xf]
        %v823 = vld [vmem:[%s3 + $0x70] sm:$0xf]
        %v824 = vld [vmem:[%s3 + $0x74] sm:$0xf]
        %v825 = vld [vmem:[%s3 + $0x78] sm:$0xf]
        %v826 = vld [vmem:[%s3 + $0x7c] sm:$0xf]
        %v827 = vld [vmem:[%s4] sm:$0x1]
        %v829 = vperm.slane %v827, 0
        %v863 = vunpack.c.l.b16 %v795
        %v864 = vunpack.c.l.b16 %v796
        %v865 = vunpack.c.l.b16 %v797
        %v866 = vunpack.c.l.b16 %v798
        %v867 = vunpack.c.l.b16 %v799
        %v868 = vunpack.c.l.b16 %v800
        %v869 = vunpack.c.l.b16 %v801
        %v870 = vunpack.c.l.b16 %v802
        %v871 = vunpack.c.l.b16 %v803
        %v872 = vunpack.c.l.b16 %v804
        %v873 = vunpack.c.l.b16 %v805
        %v874 = vunpack.c.l.b16 %v806
        %v875 = vunpack.c.l.b16 %v807
        %v876 = vunpack.c.l.b16 %v808
        %v877 = vunpack.c.l.b16 %v809
        %v878 = vunpack.c.l.b16 %v810
        %v879 = vunpack.c.l.b16 %v811
        %v880 = vunpack.c.l.b16 %v812
        %v881 = vunpack.c.l.b16 %v813
        %v882 = vunpack.c.l.b16 %v814
        %v883 = vunpack.c.l.b16 %v815
        %v884 = vunpack.c.l.b16 %v816
        %v885 = vunpack.c.l.b16 %v817
        %v886 = vunpack.c.l.b16 %v818
        %v887 = vunpack.c.l.b16 %v819
        %v888 = vunpack.c.l.b16 %v820
        %v889 = vunpack.c.l.b16 %v821
        %v890 = vunpack.c.l.b16 %v822
        %v891 = vunpack.c.l.b16 %v823
        %v892 = vunpack.c.l.b16 %v824
        %v893 = vunpack.c.l.b16 %v825
        %v894 = vunpack.c.l.b16 %v826
        %v895 = vpack.c.b16 %v864, %v863
        %v896 = vpack.c.b16 %v866, %v865
        %v897 = vpack.c.b16 %v868, %v867
        %v898 = vpack.c.b16 %v870, %v869
        %v899 = vpack.c.b16 %v872, %v871
        %v900 = vpack.c.b16 %v874, %v873
        %v901 = vpack.c.b16 %v876, %v875
        %v902 = vpack.c.b16 %v878, %v877
        %v903 = vpack.c.b16 %v880, %v879
        %v904 = vpack.c.b16 %v882, %v881
        %v905 = vpack.c.b16 %v884, %v883
        %v906 = vpack.c.b16 %v886, %v885
        %v907 = vpack.c.b16 %v888, %v887
        %v908 = vpack.c.b16 %v890, %v889
        %v909 = vpack.c.b16 %v892, %v891
        %v910 = vpack.c.b16 %v894, %v893
        %927 = vmatpush.bf16.msra.mxu0 %v902
        %928 = vmatpush.bf16.msra.mxu0 %v901
        %929 = vmatpush.bf16.msra.mxu0 %v900
        %930 = vmatpush.bf16.msra.mxu0 %v899
        %931 = vmatpush.bf16.msra.mxu0 %v898
        %932 = vmatpush.bf16.msra.mxu0 %v897
        %933 = vmatpush.bf16.msra.mxu0 %v896
        %934 = vmatpush.bf16.msra.mxu0 %v895
        %935 = vmatmul.bf16.gmra.mxu0 %v793
        %v936 = vpop.f32.mrf.mxu0
        %v937 = vadd.f32 %v829, %v936
        %v938 = vpop.f32.mrf.mxu0
        %v939 = vadd.f32 %v829, %v938
        %940 = vdwg.mxu0
        %941 = vmatpush.bf16.msra.mxu0 %v910
        %942 = vmatpush.bf16.msra.mxu0 %v909
        %943 = vmatpush.bf16.msra.mxu0 %v908
        %944 = vmatpush.bf16.msra.mxu0 %v907
        %945 = vmatpush.bf16.msra.mxu0 %v906
        %946 = vmatpush.bf16.msra.mxu0 %v905
        %947 = vmatpush.bf16.msra.mxu0 %v904
        %948 = vmatpush.bf16.msra.mxu0 %v903
        %949 = vmatmul.bf16.gmra.mxu0 %v794
        %v950 = vpop.f32.mrf.mxu0
        %v951 = vadd.f32 %v937, %v950
        %v952 = vpop.f32.mrf.mxu0
        %v953 = vadd.f32 %v939, %v952
        %954 = vdwg.mxu0
        %v955 = vld [vmem:[%s6] sm:$0x3]
        %v956 = vld [vmem:[%s5] sm:$0xff]
        %v957 = vld [vmem:[%s5 + $0x8] sm:$0xff]
        %v958 = vld [vmem:[%s5 + $0x10] sm:$0xff]
        %v959 = vld [vmem:[%s5 + $0x18] sm:$0xff]
        %v960 = vld [vmem:[%s5 + $0x20] sm:$0xff]
        %v961 = vld [vmem:[%s5 + $0x28] sm:$0xff]
        %v962 = vld [vmem:[%s5 + $0x30] sm:$0xff]
        %v963 = vld [vmem:[%s5 + $0x38] sm:$0xff]
        %v964 = vld [vmem:[%s5 + $0x40] sm:$0xff]
        %v965 = vld [vmem:[%s5 + $0x48] sm:$0xff]
        %v966 = vld [vmem:[%s5 + $0x50] sm:$0xff]
        %v967 = vld [vmem:[%s5 + $0x58] sm:$0xff]
        %v968 = vld [vmem:[%s5 + $0x60] sm:$0xff]
        %v969 = vld [vmem:[%s5 + $0x68] sm:$0xff]
        %v970 = vld [vmem:[%s5 + $0x70] sm:$0xff]
        %v971 = vld [vmem:[%s5 + $0x78] sm:$0xff]
        %v972 = vld [vmem:[%s5 + $0x80] sm:$0xff]
        %v973 = vld [vmem:[%s5 + $0x88] sm:$0xff]
        %v974 = vld [vmem:[%s5 + $0x90] sm:$0xff]
        %v975 = vld [vmem:[%s5 + $0x98] sm:$0xff]
        %v976 = vld [vmem:[%s5 + $0xa0] sm:$0xff]
        %v977 = vld [vmem:[%s5 + $0xa8] sm:$0xff]
        %v978 = vld [vmem:[%s5 + $0xb0] sm:$0xff]
        %v979 = vld [vmem:[%s5 + $0xb8] sm:$0xff]
        %v980 = vld [vmem:[%s5 + $0xc0] sm:$0xff]
        %v981 = vld [vmem:[%s5 + $0xc8] sm:$0xff]
        %v982 = vld [vmem:[%s5 + $0xd0] sm:$0xff]
        %v983 = vld [vmem:[%s5 + $0xd8] sm:$0xff]
        %v984 = vld [vmem:[%s5 + $0xe0] sm:$0xff]
        %v985 = vld [vmem:[%s5 + $0xe8] sm:$0xff]
        %v986 = vld [vmem:[%s5 + $0xf0] sm:$0xff]
        %v987 = vld [vmem:[%s5 + $0xf8] sm:$0xff]
        %988 = vmatpush.msra.mxu0 %v986
        %989 = vmatpush.msra.mxu0 %v984
        %990 = vmatpush.msra.mxu0 %v982
        %991 = vmatpush.msra.mxu0 %v980
        %992 = vmatpush.msra.mxu0 %v978
        %993 = vmatpush.msra.mxu0 %v976
        %994 = vmatpush.msra.mxu0 %v974
        %995 = vmatpush.msra.mxu0 %v972
        %996 = vmatpush.msra.mxu0 %v970
        %997 = vmatpush.msra.mxu0 %v968
        %998 = vmatpush.msra.mxu0 %v966
        %999 = vmatpush.msra.mxu0 %v964
        %1000 = vmatpush.msra.mxu0 %v962
        %1001 = vmatpush.msra.mxu0 %v960
        %1002 = vmatpush.msra.mxu0 %v958
        %1003 = vmatpush.msra.mxu0 %v956
        %1004 = vmatmul.f32.gmra.mxu0 %v951
        %v1005 = vpop.f32.mrf.mxu0
        %v1006 = vadd.f32 0.0, %v1005
        %1007 = vmatmul.f32.gmra.mxu0 %v953
        %v1008 = vpop.f32.mrf.mxu0
        %v1009 = vadd.f32 0.0, %v1008
        %1010 = vdwg.mxu0
        %1011 = vmatpush.msra.mxu0 %v987
        %1012 = vmatpush.msra.mxu0 %v985
        %1013 = vmatpush.msra.mxu0 %v983
        %1014 = vmatpush.msra.mxu0 %v981
        %1015 = vmatpush.msra.mxu0 %v979
        %1016 = vmatpush.msra.mxu0 %v977
        %1017 = vmatpush.msra.mxu0 %v975
        %1018 = vmatpush.msra.mxu0 %v973
        %1019 = vmatpush.msra.mxu0 %v971
        %1020 = vmatpush.msra.mxu0 %v969
        %1021 = vmatpush.msra.mxu0 %v967
        %1022 = vmatpush.msra.mxu0 %v965
        %1023 = vmatpush.msra.mxu0 %v963
        %1024 = vmatpush.msra.mxu0 %v961
        %1025 = vmatpush.msra.mxu0 %v959
        %1026 = vmatpush.msra.mxu0 %v957
        %1027 = vmatmul.f32.gmra.mxu0 %v951
        %v1028 = vpop.f32.mrf.mxu0
        %v1029 = vadd.f32 0.0, %v1028
        %1030 = vmatmul.f32.gmra.mxu0 %v953
        %v1031 = vpop.f32.mrf.mxu0
        %v1032 = vadd.f32 0.0, %v1031
        %1033 = vdwg.mxu0
        %v1035 = vperm.slane %v955, 0
        %v1036 = vperm.slane %v955, 1
        %v1039 = vadd.f32 %v1035, %v1006
        %v1040 = vadd.f32 %v1036, %v1029
        %v1041 = vadd.f32 %v1035, %v1009
        %v1042 = vadd.f32 %v1036, %v1032
        %v1043 = vld [vmem:[%s7] sm:$0x3]
        %1044 = vrot.lane.b32.xlu0 %v1039, 127
        %v1045 = vpop.permute.xlu0 %1044
        %1046 = vrot.lane.b32.xlu0 %v1041, 127
        %v1047 = vpop.permute.xlu0 %1046
        %1048 = vrot.lane.b32.xlu0 %v1040, 127
        %v1049 = vpop.permute.xlu0 %1048
        %1050 = vrot.lane.b32.xlu0 %v1042, 127
        %v1051 = vpop.permute.xlu0 %1050
        %v1052 = vlaneseq
        %v1053 = vand.u32 %v1052, 127
        %vm1054 = vcmp.lt.s32.totalorder %v1053, 127
        %v1055 = vsel %vm1054, %v1045, %v1049
        %v1056 = vsel %vm1054, %v1047, %v1051
        %v1057 = vsel %vm1054, %v1049, %v1045
        %v1058 = vsel %vm1054, %v1051, %v1047
        %1059 = vrot.lane.b32.xlu0 %v1039, 1
        %v1060 = vpop.permute.xlu0 %1059
        %1061 = vrot.lane.b32.xlu0 %v1041, 1
        %v1062 = vpop.permute.xlu0 %1061
        %1063 = vrot.lane.b32.xlu0 %v1040, 1
        %v1064 = vpop.permute.xlu0 %1063
        %1065 = vrot.lane.b32.xlu0 %v1042, 1
        %v1066 = vpop.permute.xlu0 %1065
        %vm1067 = vcmp.lt.s32.totalorder %v1053, 1
        %v1068 = vsel %vm1067, %v1060, %v1064
        %v1069 = vsel %vm1067, %v1062, %v1066
        %v1070 = vsel %vm1067, %v1064, %v1060
        %v1071 = vsel %vm1067, %v1066, %v1062
        %v1072 = vadd.f32 %v1043, 1.0
        %vm1073 = vcmp.lt.f32.partialorder %v1072, 32.0
        %v1074 = vmin.f32 %v1039, %v1055
        %v1075 = vmin.f32 %v1040, %v1057
        %v1076 = vmin.f32 %v1041, %v1056
        %v1077 = vmin.f32 %v1042, %v1058
        %v1078 = vsel %vm1073, 1, 0
        %v1079 = vperm.slane %v1078, 0
        %v1080 = vperm.slane %v1078, 1
        %vm1081 = vcmp.eq.s32.totalorder %v1079, 1
        %vm1082 = vcmp.eq.s32.totalorder %v1080, 1
        %v1083 = vsel %vm1081, %v1074, %v1039
        %v1084 = vsel %vm1082, %v1075, %v1040
        %v1085 = vsel %vm1081, %v1076, %v1041
        %v1086 = vsel %vm1082, %v1077, %v1042
        %vm1087 = vcmp.ge.f32.partialorder %v1043, 1.0
        %v1088 = vmin.f32 %v1083, %v1070
        %v1089 = vmin.f32 %v1084, %v1068
        %v1090 = vmin.f32 %v1085, %v1071
        %v1091 = vmin.f32 %v1086, %v1069
        %v1092 = vsel %vm1087, 1, 0
        %v1093 = vperm.slane %v1092, 0
        %v1094 = vperm.slane %v1092, 1
        %vm1095 = vcmp.eq.s32.totalorder %v1093, 1
        %vm1096 = vcmp.eq.s32.totalorder %v1094, 1
        %v1097 = vsel %vm1095, %v1088, %v1083
        %v1098 = vsel %vm1096, %v1089, %v1084
        %v1099 = vsel %vm1095, %v1090, %v1085
        %v1100 = vsel %vm1096, %v1091, %v1086
        %1101 = vrot.lane.b32.xlu0 %v1097, 126
        %v1102 = vpop.permute.xlu0 %1101
        %1103 = vrot.lane.b32.xlu0 %v1099, 126
        %v1104 = vpop.permute.xlu0 %1103
        %1105 = vrot.lane.b32.xlu0 %v1098, 126
        %v1106 = vpop.permute.xlu0 %1105
        %1107 = vrot.lane.b32.xlu0 %v1100, 126
        %v1108 = vpop.permute.xlu0 %1107
        %vm1109 = vcmp.lt.s32.totalorder %v1053, 126
        %v1110 = vsel %vm1109, %v1102, %v1106
        %v1111 = vsel %vm1109, %v1104, %v1108
        %v1112 = vsel %vm1109, %v1106, %v1102
        %v1113 = vsel %vm1109, %v1108, %v1104
        %1114 = vrot.lane.b32.xlu0 %v1097, 2
        %v1115 = vpop.permute.xlu0 %1114
        %1116 = vrot.lane.b32.xlu0 %v1099, 2
        %v1117 = vpop.permute.xlu0 %1116
        %1118 = vrot.lane.b32.xlu0 %v1098, 2
        %v1119 = vpop.permute.xlu0 %1118
        %1120 = vrot.lane.b32.xlu0 %v1100, 2
        %v1121 = vpop.permute.xlu0 %1120
        %vm1122 = vcmp.lt.s32.totalorder %v1053, 2
        %v1123 = vsel %vm1122, %v1115, %v1119
        %v1124 = vsel %vm1122, %v1117, %v1121
        %v1125 = vsel %vm1122, %v1119, %v1115
        %v1126 = vsel %vm1122, %v1121, %v1117
        %v1127 = vadd.f32 %v1043, 2.0
        %vm1128 = vcmp.lt.f32.partialorder %v1127, 32.0
        %v1129 = vmin.f32 %v1097, %v1110
        %v1130 = vmin.f32 %v1098, %v1112
        %v1131 = vmin.f32 %v1099, %v1111
        %v1132 = vmin.f32 %v1100, %v1113
        %v1133 = vsel %vm1128, 1, 0
        %v1134 = vperm.slane %v1133, 0
        %v1135 = vperm.slane %v1133, 1
        %vm1136 = vcmp.eq.s32.totalorder %v1134, 1
        %vm1137 = vcmp.eq.s32.totalorder %v1135, 1
        %v1138 = vsel %vm1136, %v1129, %v1097
        %v1139 = vsel %vm1137, %v1130, %v1098
        %v1140 = vsel %vm1136, %v1131, %v1099
        %v1141 = vsel %vm1137, %v1132, %v1100
        %vm1142 = vcmp.ge.f32.partialorder %v1043, 2.0
        %v1143 = vmin.f32 %v1138, %v1125
        %v1144 = vmin.f32 %v1139, %v1123
        %v1145 = vmin.f32 %v1140, %v1126
        %v1146 = vmin.f32 %v1141, %v1124
        %v1147 = vsel %vm1142, 1, 0
        %v1148 = vperm.slane %v1147, 0
        %v1149 = vperm.slane %v1147, 1
        %vm1150 = vcmp.eq.s32.totalorder %v1148, 1
        %vm1151 = vcmp.eq.s32.totalorder %v1149, 1
        %v1152 = vsel %vm1150, %v1143, %v1138
        %v1153 = vsel %vm1151, %v1144, %v1139
        %v1154 = vsel %vm1150, %v1145, %v1140
        %v1155 = vsel %vm1151, %v1146, %v1141
        %1156 = vrot.lane.b32.xlu0 %v1152, 124
        %v1157 = vpop.permute.xlu0 %1156
        %1158 = vrot.lane.b32.xlu0 %v1154, 124
        %v1159 = vpop.permute.xlu0 %1158
        %1160 = vrot.lane.b32.xlu0 %v1153, 124
        %v1161 = vpop.permute.xlu0 %1160
        %1162 = vrot.lane.b32.xlu0 %v1155, 124
        %v1163 = vpop.permute.xlu0 %1162
        %vm1164 = vcmp.lt.s32.totalorder %v1053, 124
        %v1165 = vsel %vm1164, %v1157, %v1161
        %v1166 = vsel %vm1164, %v1159, %v1163
        %v1167 = vsel %vm1164, %v1161, %v1157
        %v1168 = vsel %vm1164, %v1163, %v1159
        %1169 = vrot.lane.b32.xlu0 %v1152, 4
        %v1170 = vpop.permute.xlu0 %1169
        %1171 = vrot.lane.b32.xlu0 %v1154, 4
        %v1172 = vpop.permute.xlu0 %1171
        %1173 = vrot.lane.b32.xlu0 %v1153, 4
        %v1174 = vpop.permute.xlu0 %1173
        %1175 = vrot.lane.b32.xlu0 %v1155, 4
        %v1176 = vpop.permute.xlu0 %1175
        %vm1177 = vcmp.lt.s32.totalorder %v1053, 4
        %v1178 = vsel %vm1177, %v1170, %v1174
        %v1179 = vsel %vm1177, %v1172, %v1176
        %v1180 = vsel %vm1177, %v1174, %v1170
        %v1181 = vsel %vm1177, %v1176, %v1172
        %v1182 = vadd.f32 %v1043, 4.0
        %vm1183 = vcmp.lt.f32.partialorder %v1182, 32.0
        %v1184 = vmin.f32 %v1152, %v1165
        %v1185 = vmin.f32 %v1153, %v1167
        %v1186 = vmin.f32 %v1154, %v1166
        %v1187 = vmin.f32 %v1155, %v1168
        %v1188 = vsel %vm1183, 1, 0
        %v1189 = vperm.slane %v1188, 0
        %v1190 = vperm.slane %v1188, 1
        %vm1191 = vcmp.eq.s32.totalorder %v1189, 1
        %vm1192 = vcmp.eq.s32.totalorder %v1190, 1
        %v1193 = vsel %vm1191, %v1184, %v1152
        %v1194 = vsel %vm1192, %v1185, %v1153
        %v1195 = vsel %vm1191, %v1186, %v1154
        %v1196 = vsel %vm1192, %v1187, %v1155
        %vm1197 = vcmp.ge.f32.partialorder %v1043, 4.0
        %v1198 = vmin.f32 %v1193, %v1180
        %v1199 = vmin.f32 %v1194, %v1178
        %v1200 = vmin.f32 %v1195, %v1181
        %v1201 = vmin.f32 %v1196, %v1179
        %v1202 = vsel %vm1197, 1, 0
        %v1203 = vperm.slane %v1202, 0
        %v1204 = vperm.slane %v1202, 1
        %vm1205 = vcmp.eq.s32.totalorder %v1203, 1
        %vm1206 = vcmp.eq.s32.totalorder %v1204, 1
        %v1207 = vsel %vm1205, %v1198, %v1193
        %v1208 = vsel %vm1206, %v1199, %v1194
        %v1209 = vsel %vm1205, %v1200, %v1195
        %v1210 = vsel %vm1206, %v1201, %v1196
        %1211 = vrot.lane.b32.xlu0 %v1207, 120
        %v1212 = vpop.permute.xlu0 %1211
        %1213 = vrot.lane.b32.xlu0 %v1209, 120
        %v1214 = vpop.permute.xlu0 %1213
        %1215 = vrot.lane.b32.xlu0 %v1208, 120
        %v1216 = vpop.permute.xlu0 %1215
        %1217 = vrot.lane.b32.xlu0 %v1210, 120
        %v1218 = vpop.permute.xlu0 %1217
        %vm1219 = vcmp.lt.s32.totalorder %v1053, 120
        %v1220 = vsel %vm1219, %v1212, %v1216
        %v1221 = vsel %vm1219, %v1214, %v1218
        %v1222 = vsel %vm1219, %v1216, %v1212
        %v1223 = vsel %vm1219, %v1218, %v1214
        %1224 = vrot.lane.b32.xlu0 %v1207, 8
        %v1225 = vpop.permute.xlu0 %1224
        %1226 = vrot.lane.b32.xlu0 %v1209, 8
        %v1227 = vpop.permute.xlu0 %1226
        %1228 = vrot.lane.b32.xlu0 %v1208, 8
        %v1229 = vpop.permute.xlu0 %1228
        %1230 = vrot.lane.b32.xlu0 %v1210, 8
        %v1231 = vpop.permute.xlu0 %1230
        %vm1232 = vcmp.lt.s32.totalorder %v1053, 8
        %v1233 = vsel %vm1232, %v1225, %v1229
        %v1234 = vsel %vm1232, %v1227, %v1231
        %v1235 = vsel %vm1232, %v1229, %v1225
        %v1236 = vsel %vm1232, %v1231, %v1227
        %v1237 = vadd.f32 %v1043, 8.0
        %vm1238 = vcmp.lt.f32.partialorder %v1237, 32.0
        %v1239 = vmin.f32 %v1207, %v1220
        %v1240 = vmin.f32 %v1208, %v1222
        %v1241 = vmin.f32 %v1209, %v1221
        %v1242 = vmin.f32 %v1210, %v1223
        %v1243 = vsel %vm1238, 1, 0
        %v1244 = vperm.slane %v1243, 0
        %v1245 = vperm.slane %v1243, 1
        %vm1246 = vcmp.eq.s32.totalorder %v1244, 1
        %vm1247 = vcmp.eq.s32.totalorder %v1245, 1
        %v1248 = vsel %vm1246, %v1239, %v1207
        %v1249 = vsel %vm1247, %v1240, %v1208
        %v1250 = vsel %vm1246, %v1241, %v1209
        %v1251 = vsel %vm1247, %v1242, %v1210
        %vm1252 = vcmp.ge.f32.partialorder %v1043, 8.0
        %v1253 = vmin.f32 %v1248, %v1235
        %v1254 = vmin.f32 %v1249, %v1233
        %v1255 = vmin.f32 %v1250, %v1236
        %v1256 = vmin.f32 %v1251, %v1234
        %v1257 = vsel %vm1252, 1, 0
        %v1258 = vperm.slane %v1257, 0
        %v1259 = vperm.slane %v1257, 1
        %vm1260 = vcmp.eq.s32.totalorder %v1258, 1
        %vm1261 = vcmp.eq.s32.totalorder %v1259, 1
        %v1262 = vsel %vm1260, %v1253, %v1248
        %v1263 = vsel %vm1261, %v1254, %v1249
        %v1264 = vsel %vm1260, %v1255, %v1250
        %v1265 = vsel %vm1261, %v1256, %v1251
        %1266 = vrot.lane.b32.xlu0 %v1262, 112
        %v1267 = vpop.permute.xlu0 %1266
        %1268 = vrot.lane.b32.xlu0 %v1264, 112
        %v1269 = vpop.permute.xlu0 %1268
        %1270 = vrot.lane.b32.xlu0 %v1263, 112
        %v1271 = vpop.permute.xlu0 %1270
        %1272 = vrot.lane.b32.xlu0 %v1265, 112
        %v1273 = vpop.permute.xlu0 %1272
        %vm1274 = vcmp.lt.s32.totalorder %v1053, 112
        %v1275 = vsel %vm1274, %v1267, %v1271
        %v1276 = vsel %vm1274, %v1269, %v1273
        %v1277 = vsel %vm1274, %v1271, %v1267
        %v1278 = vsel %vm1274, %v1273, %v1269
        %1279 = vrot.lane.b32.xlu0 %v1262, 16
        %v1280 = vpop.permute.xlu0 %1279
        %1281 = vrot.lane.b32.xlu0 %v1264, 16
        %v1282 = vpop.permute.xlu0 %1281
        %1283 = vrot.lane.b32.xlu0 %v1263, 16
        %v1284 = vpop.permute.xlu0 %1283
        %1285 = vrot.lane.b32.xlu0 %v1265, 16
        %v1286 = vpop.permute.xlu0 %1285
        %vm1287 = vcmp.lt.s32.totalorder %v1053, 16
        %v1288 = vsel %vm1287, %v1280, %v1284
        %v1289 = vsel %vm1287, %v1282, %v1286
        %v1290 = vsel %vm1287, %v1284, %v1280
        %v1291 = vsel %vm1287, %v1286, %v1282
        %v1292 = vadd.f32 %v1043, 16.0
        %vm1293 = vcmp.lt.f32.partialorder %v1292, 32.0
        %v1294 = vmin.f32 %v1262, %v1275
        %v1295 = vmin.f32 %v1263, %v1277
        %v1296 = vmin.f32 %v1264, %v1276
        %v1297 = vmin.f32 %v1265, %v1278
        %v1298 = vsel %vm1293, 1, 0
        %v1299 = vperm.slane %v1298, 0
        %v1300 = vperm.slane %v1298, 1
        %vm1301 = vcmp.eq.s32.totalorder %v1299, 1
        %vm1302 = vcmp.eq.s32.totalorder %v1300, 1
        %v1303 = vsel %vm1301, %v1294, %v1262
        %v1304 = vsel %vm1302, %v1295, %v1263
        %v1305 = vsel %vm1301, %v1296, %v1264
        %v1306 = vsel %vm1302, %v1297, %v1265
        %vm1307 = vcmp.ge.f32.partialorder %v1043, 16.0
        %v1308 = vmin.f32 %v1303, %v1290
        %v1309 = vmin.f32 %v1304, %v1288
        %v1310 = vmin.f32 %v1305, %v1291
        %v1311 = vmin.f32 %v1306, %v1289
        %v1312 = vsel %vm1307, 1, 0
        %v1313 = vperm.slane %v1312, 0
        %v1314 = vperm.slane %v1312, 1
        %vm1315 = vcmp.eq.s32.totalorder %v1313, 1
        %vm1316 = vcmp.eq.s32.totalorder %v1314, 1
        %v1317 = vsel %vm1315, %v1308, %v1303
        %v1318 = vsel %vm1316, %v1309, %v1304
        %v1319 = vsel %vm1315, %v1310, %v1305
        %v1320 = vsel %vm1316, %v1311, %v1306
        %vm1321 = vcmp.eq.f32.partialorder %v1039, %v1317
        %vm1322 = vcmp.eq.f32.partialorder %v1040, %v1318
        %vm1323 = vcmp.eq.f32.partialorder %v1041, %v1319
        %vm1324 = vcmp.eq.f32.partialorder %v1042, %v1320
        %v1326 = vperm.slane %v1043, 0
        %v1327 = vperm.slane %v1043, 1
        %v1330 = vsel %vm1321, %v1326, 32.0
        %v1331 = vsel %vm1322, %v1327, 32.0
        %v1332 = vsel %vm1323, %v1326, 32.0
        %v1333 = vsel %vm1324, %v1327, 32.0
        %1334 = vrot.lane.b32.xlu0 %v1330, 127
        %v1335 = vpop.permute.xlu0 %1334
        %1336 = vrot.lane.b32.xlu0 %v1332, 127
        %v1337 = vpop.permute.xlu0 %1336
        %1338 = vrot.lane.b32.xlu0 %v1331, 127
        %v1339 = vpop.permute.xlu0 %1338
        %1340 = vrot.lane.b32.xlu0 %v1333, 127
        %v1341 = vpop.permute.xlu0 %1340
        %v1342 = vsel %vm1054, %v1335, %v1339
        %v1343 = vsel %vm1054, %v1337, %v1341
        %v1344 = vsel %vm1054, %v1339, %v1335
        %v1345 = vsel %vm1054, %v1341, %v1337
        %1346 = vrot.lane.b32.xlu0 %v1330, 1
        %v1347 = vpop.permute.xlu0 %1346
        %1348 = vrot.lane.b32.xlu0 %v1332, 1
        %v1349 = vpop.permute.xlu0 %1348
        %1350 = vrot.lane.b32.xlu0 %v1331, 1
        %v1351 = vpop.permute.xlu0 %1350
        %1352 = vrot.lane.b32.xlu0 %v1333, 1
        %v1353 = vpop.permute.xlu0 %1352
        %v1354 = vsel %vm1067, %v1347, %v1351
        %v1355 = vsel %vm1067, %v1349, %v1353
        %v1356 = vsel %vm1067, %v1351, %v1347
        %v1357 = vsel %vm1067, %v1353, %v1349
        %v1358 = vmin.f32 %v1330, %v1342
        %v1359 = vmin.f32 %v1331, %v1344
        %v1360 = vmin.f32 %v1332, %v1343
        %v1361 = vmin.f32 %v1333, %v1345
        %v1362 = vsel %vm1081, %v1358, %v1330
        %v1363 = vsel %vm1082, %v1359, %v1331
        %v1364 = vsel %vm1081, %v1360, %v1332
        %v1365 = vsel %vm1082, %v1361, %v1333
        %v1366 = vmin.f32 %v1362, %v1356
        %v1367 = vmin.f32 %v1363, %v1354
        %v1368 = vmin.f32 %v1364, %v1357
        %v1369 = vmin.f32 %v1365, %v1355
        %v1370 = vsel %vm1095, %v1366, %v1362
        %v1371 = vsel %vm1096, %v1367, %v1363
        %v1372 = vsel %vm1095, %v1368, %v1364
        %v1373 = vsel %vm1096, %v1369, %v1365
        %1374 = vrot.lane.b32.xlu0 %v1370, 126
        %v1375 = vpop.permute.xlu0 %1374
        %1376 = vrot.lane.b32.xlu0 %v1372, 126
        %v1377 = vpop.permute.xlu0 %1376
        %1378 = vrot.lane.b32.xlu0 %v1371, 126
        %v1379 = vpop.permute.xlu0 %1378
        %1380 = vrot.lane.b32.xlu0 %v1373, 126
        %v1381 = vpop.permute.xlu0 %1380
        %v1382 = vsel %vm1109, %v1375, %v1379
        %v1383 = vsel %vm1109, %v1377, %v1381
        %v1384 = vsel %vm1109, %v1379, %v1375
        %v1385 = vsel %vm1109, %v1381, %v1377
        %1386 = vrot.lane.b32.xlu0 %v1370, 2
        %v1387 = vpop.permute.xlu0 %1386
        %1388 = vrot.lane.b32.xlu0 %v1372, 2
        %v1389 = vpop.permute.xlu0 %1388
        %1390 = vrot.lane.b32.xlu0 %v1371, 2
        %v1391 = vpop.permute.xlu0 %1390
        %1392 = vrot.lane.b32.xlu0 %v1373, 2
        %v1393 = vpop.permute.xlu0 %1392
        %v1394 = vsel %vm1122, %v1387, %v1391
        %v1395 = vsel %vm1122, %v1389, %v1393
        %v1396 = vsel %vm1122, %v1391, %v1387
        %v1397 = vsel %vm1122, %v1393, %v1389
        %v1398 = vmin.f32 %v1370, %v1382
        %v1399 = vmin.f32 %v1371, %v1384
        %v1400 = vmin.f32 %v1372, %v1383
        %v1401 = vmin.f32 %v1373, %v1385
        %v1402 = vsel %vm1136, %v1398, %v1370
        %v1403 = vsel %vm1137, %v1399, %v1371
        %v1404 = vsel %vm1136, %v1400, %v1372
        %v1405 = vsel %vm1137, %v1401, %v1373
        %v1406 = vmin.f32 %v1402, %v1396
        %v1407 = vmin.f32 %v1403, %v1394
        %v1408 = vmin.f32 %v1404, %v1397
        %v1409 = vmin.f32 %v1405, %v1395
        %v1410 = vsel %vm1150, %v1406, %v1402
        %v1411 = vsel %vm1151, %v1407, %v1403
        %v1412 = vsel %vm1150, %v1408, %v1404
        %v1413 = vsel %vm1151, %v1409, %v1405
        %1414 = vrot.lane.b32.xlu0 %v1410, 124
        %v1415 = vpop.permute.xlu0 %1414
        %1416 = vrot.lane.b32.xlu0 %v1412, 124
        %v1417 = vpop.permute.xlu0 %1416
        %1418 = vrot.lane.b32.xlu0 %v1411, 124
        %v1419 = vpop.permute.xlu0 %1418
        %1420 = vrot.lane.b32.xlu0 %v1413, 124
        %v1421 = vpop.permute.xlu0 %1420
        %v1422 = vsel %vm1164, %v1415, %v1419
        %v1423 = vsel %vm1164, %v1417, %v1421
        %v1424 = vsel %vm1164, %v1419, %v1415
        %v1425 = vsel %vm1164, %v1421, %v1417
        %1426 = vrot.lane.b32.xlu0 %v1410, 4
        %v1427 = vpop.permute.xlu0 %1426
        %1428 = vrot.lane.b32.xlu0 %v1412, 4
        %v1429 = vpop.permute.xlu0 %1428
        %1430 = vrot.lane.b32.xlu0 %v1411, 4
        %v1431 = vpop.permute.xlu0 %1430
        %1432 = vrot.lane.b32.xlu0 %v1413, 4
        %v1433 = vpop.permute.xlu0 %1432
        %v1434 = vsel %vm1177, %v1427, %v1431
        %v1435 = vsel %vm1177, %v1429, %v1433
        %v1436 = vsel %vm1177, %v1431, %v1427
        %v1437 = vsel %vm1177, %v1433, %v1429
        %v1438 = vmin.f32 %v1410, %v1422
        %v1439 = vmin.f32 %v1411, %v1424
        %v1440 = vmin.f32 %v1412, %v1423
        %v1441 = vmin.f32 %v1413, %v1425
        %v1442 = vsel %vm1191, %v1438, %v1410
        %v1443 = vsel %vm1192, %v1439, %v1411
        %v1444 = vsel %vm1191, %v1440, %v1412
        %v1445 = vsel %vm1192, %v1441, %v1413
        %v1446 = vmin.f32 %v1442, %v1436
        %v1447 = vmin.f32 %v1443, %v1434
        %v1448 = vmin.f32 %v1444, %v1437
        %v1449 = vmin.f32 %v1445, %v1435
        %v1450 = vsel %vm1205, %v1446, %v1442
        %v1451 = vsel %vm1206, %v1447, %v1443
        %v1452 = vsel %vm1205, %v1448, %v1444
        %v1453 = vsel %vm1206, %v1449, %v1445
        %1454 = vrot.lane.b32.xlu0 %v1450, 120
        %v1455 = vpop.permute.xlu0 %1454
        %1456 = vrot.lane.b32.xlu0 %v1452, 120
        %v1457 = vpop.permute.xlu0 %1456
        %1458 = vrot.lane.b32.xlu0 %v1451, 120
        %v1459 = vpop.permute.xlu0 %1458
        %1460 = vrot.lane.b32.xlu0 %v1453, 120
        %v1461 = vpop.permute.xlu0 %1460
        %v1462 = vsel %vm1219, %v1455, %v1459
        %v1463 = vsel %vm1219, %v1457, %v1461
        %v1464 = vsel %vm1219, %v1459, %v1455
        %v1465 = vsel %vm1219, %v1461, %v1457
        %1466 = vrot.lane.b32.xlu0 %v1450, 8
        %v1467 = vpop.permute.xlu0 %1466
        %1468 = vrot.lane.b32.xlu0 %v1452, 8
        %v1469 = vpop.permute.xlu0 %1468
        %1470 = vrot.lane.b32.xlu0 %v1451, 8
        %v1471 = vpop.permute.xlu0 %1470
        %1472 = vrot.lane.b32.xlu0 %v1453, 8
        %v1473 = vpop.permute.xlu0 %1472
        %v1474 = vsel %vm1232, %v1467, %v1471
        %v1475 = vsel %vm1232, %v1469, %v1473
        %v1476 = vsel %vm1232, %v1471, %v1467
        %v1477 = vsel %vm1232, %v1473, %v1469
        %v1478 = vmin.f32 %v1450, %v1462
        %v1479 = vmin.f32 %v1451, %v1464
        %v1480 = vmin.f32 %v1452, %v1463
        %v1481 = vmin.f32 %v1453, %v1465
        %v1482 = vsel %vm1246, %v1478, %v1450
        %v1483 = vsel %vm1247, %v1479, %v1451
        %v1484 = vsel %vm1246, %v1480, %v1452
        %v1485 = vsel %vm1247, %v1481, %v1453
        %v1486 = vmin.f32 %v1482, %v1476
        %v1487 = vmin.f32 %v1483, %v1474
        %v1488 = vmin.f32 %v1484, %v1477
        %v1489 = vmin.f32 %v1485, %v1475
        %v1490 = vsel %vm1260, %v1486, %v1482
        %v1491 = vsel %vm1261, %v1487, %v1483
        %v1492 = vsel %vm1260, %v1488, %v1484
        %v1493 = vsel %vm1261, %v1489, %v1485
        %1494 = vrot.lane.b32.xlu0 %v1490, 112
        %v1495 = vpop.permute.xlu0 %1494
        %1496 = vrot.lane.b32.xlu0 %v1492, 112
        %v1497 = vpop.permute.xlu0 %1496
        %1498 = vrot.lane.b32.xlu0 %v1491, 112
        %v1499 = vpop.permute.xlu0 %1498
        %1500 = vrot.lane.b32.xlu0 %v1493, 112
        %v1501 = vpop.permute.xlu0 %1500
        %v1502 = vsel %vm1274, %v1495, %v1499
        %v1503 = vsel %vm1274, %v1497, %v1501
        %v1504 = vsel %vm1274, %v1499, %v1495
        %v1505 = vsel %vm1274, %v1501, %v1497
        %1506 = vrot.lane.b32.xlu0 %v1490, 16
        %v1507 = vpop.permute.xlu0 %1506
        %1508 = vrot.lane.b32.xlu0 %v1492, 16
        %v1509 = vpop.permute.xlu0 %1508
        %1510 = vrot.lane.b32.xlu0 %v1491, 16
        %v1511 = vpop.permute.xlu0 %1510
        %1512 = vrot.lane.b32.xlu0 %v1493, 16
        %v1513 = vpop.permute.xlu0 %1512
        %v1514 = vsel %vm1287, %v1507, %v1511
        %v1515 = vsel %vm1287, %v1509, %v1513
        %v1516 = vsel %vm1287, %v1511, %v1507
        %v1517 = vsel %vm1287, %v1513, %v1509
        %v1518 = vmin.f32 %v1490, %v1502
        %v1519 = vmin.f32 %v1491, %v1504
        %v1520 = vmin.f32 %v1492, %v1503
        %v1521 = vmin.f32 %v1493, %v1505
        %v1522 = vsel %vm1301, %v1518, %v1490
        %v1523 = vsel %vm1302, %v1519, %v1491
        %v1524 = vsel %vm1301, %v1520, %v1492
        %v1525 = vsel %vm1302, %v1521, %v1493
        %v1526 = vmin.f32 %v1522, %v1516
        %v1527 = vmin.f32 %v1523, %v1514
        %v1528 = vmin.f32 %v1524, %v1517
        %v1529 = vmin.f32 %v1525, %v1515
        %v1530 = vsel %vm1315, %v1526, %v1522
        %v1531 = vsel %vm1316, %v1527, %v1523
        %v1532 = vsel %vm1315, %v1528, %v1524
        %v1533 = vsel %vm1316, %v1529, %v1525
        %v1534 = vcvt.f32.s32.to.zero.pseudo %v1530
        %v1535 = vcvt.f32.s32.to.zero.pseudo %v1531
        %v1536 = vcvt.f32.s32.to.zero.pseudo %v1532
        %v1537 = vcvt.f32.s32.to.zero.pseudo %v1533
        %1538 = vst [vmem:[%s518] sm:$0xff] %v1534
        %1539 = vst [vmem:[%s518 + $0x8] sm:$0xff] %v1535
        %1540 = vst [vmem:[%s518 + $0x10] sm:$0xff] %v1536
        %1541 = vst [vmem:[%s518 + $0x18] sm:$0xff] %v1537
        %vm1542 = vcmp.eq.f32.partialorder %v1326, %v1530
        %vm1543 = vcmp.eq.f32.partialorder %v1327, %v1531
        %vm1544 = vcmp.eq.f32.partialorder %v1326, %v1532
        %vm1545 = vcmp.eq.f32.partialorder %v1327, %v1533
        %v1546 = vsel %vm1542, 1, 0
        %v1547 = vsel %vm1543, 1, 0
        %v1548 = vsel %vm1544, 1, 0
        %v1549 = vsel %vm1545, 1, 0
        %v1550 = vcvt.s32.f32 %v1546
        %v1551 = vcvt.s32.f32 %v1547
        %v1552 = vcvt.s32.f32 %v1548
        %v1553 = vcvt.s32.f32 %v1549
        %v1554 = vld [vmem:[%s8] sm:$0xff]
        %v1555 = vld [vmem:[%s8 + $0x8] sm:$0xff]
        %v1556 = vld [vmem:[%s8 + $0x10] sm:$0xff]
        %v1557 = vld [vmem:[%s8 + $0x18] sm:$0xff]
        %v1558 = vld [vmem:[%s8 + $0x20] sm:$0xff]
        %v1559 = vld [vmem:[%s8 + $0x28] sm:$0xff]
        %v1560 = vld [vmem:[%s8 + $0x30] sm:$0xff]
        %v1561 = vld [vmem:[%s8 + $0x38] sm:$0xff]
        %v1562 = vld [vmem:[%s8 + $0x40] sm:$0xff]
        %v1563 = vld [vmem:[%s8 + $0x48] sm:$0xff]
        %v1564 = vld [vmem:[%s8 + $0x50] sm:$0xff]
        %v1565 = vld [vmem:[%s8 + $0x58] sm:$0xff]
        %v1566 = vld [vmem:[%s8 + $0x60] sm:$0xff]
        %v1567 = vld [vmem:[%s8 + $0x68] sm:$0xff]
        %v1568 = vld [vmem:[%s8 + $0x70] sm:$0xff]
        %v1569 = vld [vmem:[%s8 + $0x78] sm:$0xff]
        %v1570 = vld [vmem:[%s8 + $0x80] sm:$0xff]
        %v1571 = vld [vmem:[%s8 + $0x88] sm:$0xff]
        %v1572 = vld [vmem:[%s8 + $0x90] sm:$0xff]
        %v1573 = vld [vmem:[%s8 + $0x98] sm:$0xff]
        %v1574 = vld [vmem:[%s8 + $0xa0] sm:$0xff]
        %v1575 = vld [vmem:[%s8 + $0xa8] sm:$0xff]
        %v1576 = vld [vmem:[%s8 + $0xb0] sm:$0xff]
        %v1577 = vld [vmem:[%s8 + $0xb8] sm:$0xff]
        %v1578 = vld [vmem:[%s8 + $0xc0] sm:$0xff]
        %v1579 = vld [vmem:[%s8 + $0xc8] sm:$0xff]
        %v1580 = vld [vmem:[%s8 + $0xd0] sm:$0xff]
        %v1581 = vld [vmem:[%s8 + $0xd8] sm:$0xff]
        %v1582 = vld [vmem:[%s8 + $0xe0] sm:$0xff]
        %v1583 = vld [vmem:[%s8 + $0xe8] sm:$0xff]
        %v1584 = vld [vmem:[%s8 + $0xf0] sm:$0xff]
        %v1585 = vld [vmem:[%s8 + $0xf8] sm:$0xff]
        %1586 = vmatpush.msra.mxu0 %v1569
        %1587 = vmatpush.msra.mxu0 %v1568
        %1588 = vmatpush.msra.mxu0 %v1567
        %1589 = vmatpush.msra.mxu0 %v1566
        %1590 = vmatpush.msra.mxu0 %v1565
        %1591 = vmatpush.msra.mxu0 %v1564
        %1592 = vmatpush.msra.mxu0 %v1563
        %1593 = vmatpush.msra.mxu0 %v1562
        %1594 = vmatpush.msra.mxu0 %v1561
        %1595 = vmatpush.msra.mxu0 %v1560
        %1596 = vmatpush.msra.mxu0 %v1559
        %1597 = vmatpush.msra.mxu0 %v1558
        %1598 = vmatpush.msra.mxu0 %v1557
        %1599 = vmatpush.msra.mxu0 %v1556
        %1600 = vmatpush.msra.mxu0 %v1555
        %1601 = vmatpush.msra.mxu0 %v1554
        %1602 = vmatmul.f32.gmra.mxu0 %v1550
        %v1603 = vpop.f32.mrf.mxu0
        %v1604 = vadd.f32 0.0, %v1603
        %1605 = vmatmul.f32.gmra.mxu0 %v1552
        %v1606 = vpop.f32.mrf.mxu0
        %v1607 = vadd.f32 0.0, %v1606
        %1608 = vdwg.mxu0
        %1609 = vmatpush.msra.mxu0 %v1585
        %1610 = vmatpush.msra.mxu0 %v1584
        %1611 = vmatpush.msra.mxu0 %v1583
        %1612 = vmatpush.msra.mxu0 %v1582
        %1613 = vmatpush.msra.mxu0 %v1581
        %1614 = vmatpush.msra.mxu0 %v1580
        %1615 = vmatpush.msra.mxu0 %v1579
        %1616 = vmatpush.msra.mxu0 %v1578
        %1617 = vmatpush.msra.mxu0 %v1577
        %1618 = vmatpush.msra.mxu0 %v1576
        %1619 = vmatpush.msra.mxu0 %v1575
        %1620 = vmatpush.msra.mxu0 %v1574
        %1621 = vmatpush.msra.mxu0 %v1573
        %1622 = vmatpush.msra.mxu0 %v1572
        %1623 = vmatpush.msra.mxu0 %v1571
        %1624 = vmatpush.msra.mxu0 %v1570
        %1625 = vmatmul.f32.gmra.mxu0 %v1551
        %v1626 = vpop.f32.mrf.mxu0
        %v1627 = vadd.f32 %v1604, %v1626
        %1628 = vmatmul.f32.gmra.mxu0 %v1553
        %v1629 = vpop.f32.mrf.mxu0
        %v1630 = vadd.f32 %v1607, %v1629
        %1631 = vdwg.mxu0
        %v1632 = vsub.f32 %v1627, %v951
        %v1633 = vsub.f32 %v1630, %v953
        %v1634 = vmul.f32 %v1632, %v1632
        %v1635 = vmul.f32 %v1633, %v1633
        %v1636 = vadd.f32 %v1634, %v1635
        %v1637 = vrot.slane %v1636, 4
        %v1638 = vadd.f32 %v1636, %v1637
        %v1639 = vrot.slane %v1638, 2
        %v1640 = vadd.f32 %v1638, %v1639
        %v1641 = vrot.slane %v1640, 1
        %v1642 = vadd.f32 %v1640, %v1641
        %1643 = vst [vmem:[%s522] sm:$0x1] %v1642
        %v1644 = vpack.c.bf16 %v1630, %v1627
        %v1645 = vld [vmem:[%s9] sm:$0xff]
        %v1646 = vld [vmem:[%s9 + $0x8] sm:$0xff]
        %v1647 = vld [vmem:[%s9 + $0x10] sm:$0xff]
        %v1648 = vld [vmem:[%s9 + $0x18] sm:$0xff]
        %v1649 = vld [vmem:[%s9 + $0x20] sm:$0xff]
        %v1650 = vld [vmem:[%s9 + $0x28] sm:$0xff]
        %v1651 = vld [vmem:[%s9 + $0x30] sm:$0xff]
        %v1652 = vld [vmem:[%s9 + $0x38] sm:$0xff]
        %v1653 = vld [vmem:[%s9 + $0x40] sm:$0xff]
        %v1654 = vld [vmem:[%s9 + $0x48] sm:$0xff]
        %v1655 = vld [vmem:[%s9 + $0x50] sm:$0xff]
        %v1656 = vld [vmem:[%s9 + $0x58] sm:$0xff]
        %v1657 = vld [vmem:[%s9 + $0x60] sm:$0xff]
        %v1658 = vld [vmem:[%s9 + $0x68] sm:$0xff]
        %v1659 = vld [vmem:[%s9 + $0x70] sm:$0xff]
        %v1660 = vld [vmem:[%s9 + $0x78] sm:$0xff]
        %v1661 = vld [vmem:[%s10] sm:$0x3]
        %v1663 = vperm.slane %v1661, 0
        %v1664 = vperm.slane %v1661, 1
        %v1683 = vunpack.c.l.b16 %v1645
        %v1684 = vunpack.c.h.b16 %v1645
        %v1685 = vunpack.c.l.b16 %v1646
        %v1686 = vunpack.c.h.b16 %v1646
        %v1687 = vunpack.c.l.b16 %v1647
        %v1688 = vunpack.c.h.b16 %v1647
        %v1689 = vunpack.c.l.b16 %v1648
        %v1690 = vunpack.c.h.b16 %v1648
        %v1691 = vunpack.c.l.b16 %v1649
        %v1692 = vunpack.c.h.b16 %v1649
        %v1693 = vunpack.c.l.b16 %v1650
        %v1694 = vunpack.c.h.b16 %v1650
        %v1695 = vunpack.c.l.b16 %v1651
        %v1696 = vunpack.c.h.b16 %v1651
        %v1697 = vunpack.c.l.b16 %v1652
        %v1698 = vunpack.c.h.b16 %v1652
        %v1699 = vunpack.c.l.b16 %v1653
        %v1700 = vunpack.c.h.b16 %v1653
        %v1701 = vunpack.c.l.b16 %v1654
        %v1702 = vunpack.c.h.b16 %v1654
        %v1703 = vunpack.c.l.b16 %v1655
        %v1704 = vunpack.c.h.b16 %v1655
        %v1705 = vunpack.c.l.b16 %v1656
        %v1706 = vunpack.c.h.b16 %v1656
        %v1707 = vunpack.c.l.b16 %v1657
        %v1708 = vunpack.c.h.b16 %v1657
        %v1709 = vunpack.c.l.b16 %v1658
        %v1710 = vunpack.c.h.b16 %v1658
        %v1711 = vunpack.c.l.b16 %v1659
        %v1712 = vunpack.c.h.b16 %v1659
        %v1713 = vunpack.c.l.b16 %v1660
        %v1714 = vunpack.c.h.b16 %v1660
        %v1715 = vpack.c.b16 %v1685, %v1683
        %v1716 = vpack.c.b16 %v1686, %v1684
        %v1717 = vpack.c.b16 %v1689, %v1687
        %v1718 = vpack.c.b16 %v1690, %v1688
        %v1719 = vpack.c.b16 %v1693, %v1691
        %v1720 = vpack.c.b16 %v1694, %v1692
        %v1721 = vpack.c.b16 %v1697, %v1695
        %v1722 = vpack.c.b16 %v1698, %v1696
        %v1723 = vpack.c.b16 %v1701, %v1699
        %v1724 = vpack.c.b16 %v1702, %v1700
        %v1725 = vpack.c.b16 %v1705, %v1703
        %v1726 = vpack.c.b16 %v1706, %v1704
        %v1727 = vpack.c.b16 %v1709, %v1707
        %v1728 = vpack.c.b16 %v1710, %v1708
        %v1729 = vpack.c.b16 %v1713, %v1711
        %v1730 = vpack.c.b16 %v1714, %v1712
        %1747 = vmatpush.bf16.msra.mxu0 %v1729
        %1748 = vmatpush.bf16.msra.mxu0 %v1727
        %1749 = vmatpush.bf16.msra.mxu0 %v1725
        %1750 = vmatpush.bf16.msra.mxu0 %v1723
        %1751 = vmatpush.bf16.msra.mxu0 %v1721
        %1752 = vmatpush.bf16.msra.mxu0 %v1719
        %1753 = vmatpush.bf16.msra.mxu0 %v1717
        %1754 = vmatpush.bf16.msra.mxu0 %v1715
        %1755 = vmatmul.bf16.gmra.mxu0 %v1644
        %v1756 = vpop.f32.mrf.mxu0
        %v1757 = vadd.f32 %v1663, %v1756
        %v1758 = vpop.f32.mrf.mxu0
        %v1759 = vadd.f32 %v1663, %v1758
        %1760 = vdwg.mxu0
        %1761 = vmatpush.bf16.msra.mxu0 %v1730
        %1762 = vmatpush.bf16.msra.mxu0 %v1728
        %1763 = vmatpush.bf16.msra.mxu0 %v1726
        %1764 = vmatpush.bf16.msra.mxu0 %v1724
        %1765 = vmatpush.bf16.msra.mxu0 %v1722
        %1766 = vmatpush.bf16.msra.mxu0 %v1720
        %1767 = vmatpush.bf16.msra.mxu0 %v1718
        %1768 = vmatpush.bf16.msra.mxu0 %v1716
        %1769 = vmatmul.bf16.gmra.mxu0 %v1644
        %v1770 = vpop.f32.mrf.mxu0
        %v1771 = vadd.f32 %v1664, %v1770
        %v1772 = vpop.f32.mrf.mxu0
        %v1773 = vadd.f32 %v1664, %v1772
        %1774 = vdwg.mxu0
        %v1775 = vmax.f32 %v1757, 0.0
        %v1776 = vmax.f32 %v1771, 0.0
        %v1777 = vmax.f32 %v1759, 0.0
        %v1778 = vmax.f32 %v1773, 0.0
        %v1779 = vpack.c.bf16 %v1777, %v1775
        %v1780 = vpack.c.bf16 %v1778, %v1776
        %v1781 = vld [vmem:[%s11] sm:$0xff]
        %v1782 = vld [vmem:[%s11 + $0x8] sm:$0xff]
        %v1783 = vld [vmem:[%s11 + $0x10] sm:$0xff]
        %v1784 = vld [vmem:[%s11 + $0x18] sm:$0xff]
        %v1785 = vld [vmem:[%s11 + $0x20] sm:$0xff]
        %v1786 = vld [vmem:[%s11 + $0x28] sm:$0xff]
        %v1787 = vld [vmem:[%s11 + $0x30] sm:$0xff]
        %v1788 = vld [vmem:[%s11 + $0x38] sm:$0xff]
        %v1789 = vld [vmem:[%s11 + $0x40] sm:$0xff]
        %v1790 = vld [vmem:[%s11 + $0x48] sm:$0xff]
        %v1791 = vld [vmem:[%s11 + $0x50] sm:$0xff]
        %v1792 = vld [vmem:[%s11 + $0x58] sm:$0xff]
        %v1793 = vld [vmem:[%s11 + $0x60] sm:$0xff]
        %v1794 = vld [vmem:[%s11 + $0x68] sm:$0xff]
        %v1795 = vld [vmem:[%s11 + $0x70] sm:$0xff]
        %v1796 = vld [vmem:[%s11 + $0x78] sm:$0xff]
        %v1797 = vld [vmem:[%s11 + $0x80] sm:$0xff]
        %v1798 = vld [vmem:[%s11 + $0x88] sm:$0xff]
        %v1799 = vld [vmem:[%s11 + $0x90] sm:$0xff]
        %v1800 = vld [vmem:[%s11 + $0x98] sm:$0xff]
        %v1801 = vld [vmem:[%s11 + $0xa0] sm:$0xff]
        %v1802 = vld [vmem:[%s11 + $0xa8] sm:$0xff]
        %v1803 = vld [vmem:[%s11 + $0xb0] sm:$0xff]
        %v1804 = vld [vmem:[%s11 + $0xb8] sm:$0xff]
        %v1805 = vld [vmem:[%s11 + $0xc0] sm:$0xff]
        %v1806 = vld [vmem:[%s11 + $0xc8] sm:$0xff]
        %v1807 = vld [vmem:[%s11 + $0xd0] sm:$0xff]
        %v1808 = vld [vmem:[%s11 + $0xd8] sm:$0xff]
        %v1809 = vld [vmem:[%s11 + $0xe0] sm:$0xff]
        %v1810 = vld [vmem:[%s11 + $0xe8] sm:$0xff]
        %v1811 = vld [vmem:[%s11 + $0xf0] sm:$0xff]
        %v1812 = vld [vmem:[%s11 + $0xf8] sm:$0xff]
        %v1813 = vld [vmem:[%s12] sm:$0x3]
        %v1815 = vperm.slane %v1813, 0
        %v1816 = vperm.slane %v1813, 1
        %v1851 = vunpack.c.l.b16 %v1781
        %v1852 = vunpack.c.h.b16 %v1781
        %v1853 = vunpack.c.l.b16 %v1782
        %v1854 = vunpack.c.h.b16 %v1782
        %v1855 = vunpack.c.l.b16 %v1783
        %v1856 = vunpack.c.h.b16 %v1783
        %v1857 = vunpack.c.l.b16 %v1784
        %v1858 = vunpack.c.h.b16 %v1784
        %v1859 = vunpack.c.l.b16 %v1785
        %v1860 = vunpack.c.h.b16 %v1785
        %v1861 = vunpack.c.l.b16 %v1786
        %v1862 = vunpack.c.h.b16 %v1786
        %v1863 = vunpack.c.l.b16 %v1787
        %v1864 = vunpack.c.h.b16 %v1787
        %v1865 = vunpack.c.l.b16 %v1788
        %v1866 = vunpack.c.h.b16 %v1788
        %v1867 = vunpack.c.l.b16 %v1789
        %v1868 = vunpack.c.h.b16 %v1789
        %v1869 = vunpack.c.l.b16 %v1790
        %v1870 = vunpack.c.h.b16 %v1790
        %v1871 = vunpack.c.l.b16 %v1791
        %v1872 = vunpack.c.h.b16 %v1791
        %v1873 = vunpack.c.l.b16 %v1792
        %v1874 = vunpack.c.h.b16 %v1792
        %v1875 = vunpack.c.l.b16 %v1793
        %v1876 = vunpack.c.h.b16 %v1793
        %v1877 = vunpack.c.l.b16 %v1794
        %v1878 = vunpack.c.h.b16 %v1794
        %v1879 = vunpack.c.l.b16 %v1795
        %v1880 = vunpack.c.h.b16 %v1795
        %v1881 = vunpack.c.l.b16 %v1796
        %v1882 = vunpack.c.h.b16 %v1796
        %v1883 = vunpack.c.l.b16 %v1797
        %v1884 = vunpack.c.h.b16 %v1797
        %v1885 = vunpack.c.l.b16 %v1798
        %v1886 = vunpack.c.h.b16 %v1798
        %v1887 = vunpack.c.l.b16 %v1799
        %v1888 = vunpack.c.h.b16 %v1799
        %v1889 = vunpack.c.l.b16 %v1800
        %v1890 = vunpack.c.h.b16 %v1800
        %v1891 = vunpack.c.l.b16 %v1801
        %v1892 = vunpack.c.h.b16 %v1801
        %v1893 = vunpack.c.l.b16 %v1802
        %v1894 = vunpack.c.h.b16 %v1802
        %v1895 = vunpack.c.l.b16 %v1803
        %v1896 = vunpack.c.h.b16 %v1803
        %v1897 = vunpack.c.l.b16 %v1804
        %v1898 = vunpack.c.h.b16 %v1804
        %v1899 = vunpack.c.l.b16 %v1805
        %v1900 = vunpack.c.h.b16 %v1805
        %v1901 = vunpack.c.l.b16 %v1806
        %v1902 = vunpack.c.h.b16 %v1806
        %v1903 = vunpack.c.l.b16 %v1807
        %v1904 = vunpack.c.h.b16 %v1807
        %v1905 = vunpack.c.l.b16 %v1808
        %v1906 = vunpack.c.h.b16 %v1808
        %v1907 = vunpack.c.l.b16 %v1809
        %v1908 = vunpack.c.h.b16 %v1809
        %v1909 = vunpack.c.l.b16 %v1810
        %v1910 = vunpack.c.h.b16 %v1810
        %v1911 = vunpack.c.l.b16 %v1811
        %v1912 = vunpack.c.h.b16 %v1811
        %v1913 = vunpack.c.l.b16 %v1812
        %v1914 = vunpack.c.h.b16 %v1812
        %v1915 = vpack.c.b16 %v1853, %v1851
        %v1916 = vpack.c.b16 %v1854, %v1852
        %v1917 = vpack.c.b16 %v1857, %v1855
        %v1918 = vpack.c.b16 %v1858, %v1856
        %v1919 = vpack.c.b16 %v1861, %v1859
        %v1920 = vpack.c.b16 %v1862, %v1860
        %v1921 = vpack.c.b16 %v1865, %v1863
        %v1922 = vpack.c.b16 %v1866, %v1864
        %v1923 = vpack.c.b16 %v1869, %v1867
        %v1924 = vpack.c.b16 %v1870, %v1868
        %v1925 = vpack.c.b16 %v1873, %v1871
        %v1926 = vpack.c.b16 %v1874, %v1872
        %v1927 = vpack.c.b16 %v1877, %v1875
        %v1928 = vpack.c.b16 %v1878, %v1876
        %v1929 = vpack.c.b16 %v1881, %v1879
        %v1930 = vpack.c.b16 %v1882, %v1880
        %v1931 = vpack.c.b16 %v1885, %v1883
        %v1932 = vpack.c.b16 %v1886, %v1884
        %v1933 = vpack.c.b16 %v1889, %v1887
        %v1934 = vpack.c.b16 %v1890, %v1888
        %v1935 = vpack.c.b16 %v1893, %v1891
        %v1936 = vpack.c.b16 %v1894, %v1892
        %v1937 = vpack.c.b16 %v1897, %v1895
        %v1938 = vpack.c.b16 %v1898, %v1896
        %v1939 = vpack.c.b16 %v1901, %v1899
        %v1940 = vpack.c.b16 %v1902, %v1900
        %v1941 = vpack.c.b16 %v1905, %v1903
        %v1942 = vpack.c.b16 %v1906, %v1904
        %v1943 = vpack.c.b16 %v1909, %v1907
        %v1944 = vpack.c.b16 %v1910, %v1908
        %v1945 = vpack.c.b16 %v1913, %v1911
        %v1946 = vpack.c.b16 %v1914, %v1912
        %1979 = vmatpush.bf16.msra.mxu0 %v1929
        %1980 = vmatpush.bf16.msra.mxu0 %v1927
        %1981 = vmatpush.bf16.msra.mxu0 %v1925
        %1982 = vmatpush.bf16.msra.mxu0 %v1923
        %1983 = vmatpush.bf16.msra.mxu0 %v1921
        %1984 = vmatpush.bf16.msra.mxu0 %v1919
        %1985 = vmatpush.bf16.msra.mxu0 %v1917
        %1986 = vmatpush.bf16.msra.mxu0 %v1915
        %1987 = vmatmul.bf16.gmra.mxu0 %v1779
        %v1988 = vpop.f32.mrf.mxu0
        %v1989 = vadd.f32 %v1815, %v1988
        %v1990 = vpop.f32.mrf.mxu0
        %v1991 = vadd.f32 %v1815, %v1990
        %1992 = vdwg.mxu0
        %1993 = vmatpush.bf16.msra.mxu0 %v1945
        %1994 = vmatpush.bf16.msra.mxu0 %v1943
        %1995 = vmatpush.bf16.msra.mxu0 %v1941
        %1996 = vmatpush.bf16.msra.mxu0 %v1939
        %1997 = vmatpush.bf16.msra.mxu0 %v1937
        %1998 = vmatpush.bf16.msra.mxu0 %v1935
        %1999 = vmatpush.bf16.msra.mxu0 %v1933
        %2000 = vmatpush.bf16.msra.mxu0 %v1931
        %2001 = vmatmul.bf16.gmra.mxu0 %v1780
        %v2002 = vpop.f32.mrf.mxu0
        %v2003 = vadd.f32 %v1989, %v2002
        %v2004 = vpop.f32.mrf.mxu0
        %v2005 = vadd.f32 %v1991, %v2004
        %2006 = vdwg.mxu0
        %2007 = vmatpush.bf16.msra.mxu0 %v1930
        %2008 = vmatpush.bf16.msra.mxu0 %v1928
        %2009 = vmatpush.bf16.msra.mxu0 %v1926
        %2010 = vmatpush.bf16.msra.mxu0 %v1924
        %2011 = vmatpush.bf16.msra.mxu0 %v1922
        %2012 = vmatpush.bf16.msra.mxu0 %v1920
        %2013 = vmatpush.bf16.msra.mxu0 %v1918
        %2014 = vmatpush.bf16.msra.mxu0 %v1916
        %2015 = vmatmul.bf16.gmra.mxu0 %v1779
        %v2016 = vpop.f32.mrf.mxu0
        %v2017 = vadd.f32 %v1816, %v2016
        %v2018 = vpop.f32.mrf.mxu0
        %v2019 = vadd.f32 %v1816, %v2018
        %2020 = vdwg.mxu0
        %2021 = vmatpush.bf16.msra.mxu0 %v1946
        %2022 = vmatpush.bf16.msra.mxu0 %v1944
        %2023 = vmatpush.bf16.msra.mxu0 %v1942
        %2024 = vmatpush.bf16.msra.mxu0 %v1940
        %2025 = vmatpush.bf16.msra.mxu0 %v1938
        %2026 = vmatpush.bf16.msra.mxu0 %v1936
        %2027 = vmatpush.bf16.msra.mxu0 %v1934
        %2028 = vmatpush.bf16.msra.mxu0 %v1932
        %2029 = vmatmul.bf16.gmra.mxu0 %v1780
        %v2030 = vpop.f32.mrf.mxu0
        %v2031 = vadd.f32 %v2017, %v2030
        %v2032 = vpop.f32.mrf.mxu0
        %v2033 = vadd.f32 %v2019, %v2032
        %2034 = vdwg.mxu0
        %2035 = vst [vmem:[%s491] sm:$0xff] %v2003
        %2036 = vst [vmem:[%s491 + $0x8] sm:$0xff] %v2031
        %2037 = vst [vmem:[%s491 + $0x10] sm:$0xff] %v2005
        %2038 = vst [vmem:[%s491 + $0x18] sm:$0xff] %v2033
        %s2039 = sand.u32 %s316, 1
        %s2040 = scalar_lea.sflag [#allocation3], %s2039
        %s2041 = sand.u32 %s316, 1
        %s2042 = smul.addr %s2041, 32
        %s2043 = scalar_lea.vmem [#allocation2], %s2042
        %s2044 = smul.u32 2, %s30
        %p2045 = scmp.lt.s32.totalorder %s2044, 3
        %s2046 = scalar_select %p2045, %s2044, 3
        %s2047 = smul.addr %s2046, 2
        %s2048 = smul.addr %s2047, 8
        %s2049 = scalar_lea.vmem %s14, %s2048
        %p2050 = scmp.lt.s32.totalorder %s30, 1
        %s2051 = scalar_select %p2050, %s30, 1
        %s2052 = scalar_lea.vmem %s15, %s2051
        // Predicated region
        $region73: #{vqvae_forward.1} parent=71 // pred_check
          %p2053 = pneg %p326
        $region74: #{vqvae_forward.1} parent=71 // pred_check_branch
          %2055 = sbr.rel (%p2053) target = $region76
        $region75: #{vqvae_forward.1} parent=71 // pred_region
          %s2056 = smul.u32 2, %s30
          %2058 = vsyncadd %s2040, 0
          %s2059 = smul.addr %s2056, 2
          %s2060 = smul.addr %s2059, 8
          %s2061 = scalar_lea.hbm %s13, %s2060
          %s2062 = sshll.u32 %s2043, 4
          %s2063 = int_to_ptr.vmem [resolvable:$true] %s2062
          %s2064 = sshll.u32 %s2061, 4
          %s2065 = int_to_ptr.hbm [resolvable:$true] %s2064
          %2070 = dma.vmem_to_hbm [thread:$0]  %s2063, 512, %s2065, %s2040, 256, 256, 16
        $region76: #{vqvae_forward.1} parent=71 // pred_fallthru
          _
        // Predicated region
        $region77: #{vqvae_forward.1} parent=71 // pred_check
          %p2071 = pneg %p352
        $region78: #{vqvae_forward.1} parent=71 // pred_check_branch
          %2073 = sbr.rel (%p2071) target = $region80
        $region79: #{vqvae_forward.1} parent=71 // pred_region
          %s2074 = smul.u32 2, %s30
        $region80: #{vqvae_forward.1} parent=71 // pred_fallthru
          _
        // Predicated region
        $region81: #{vqvae_forward.1} parent=71 // pred_check
          %p2075 = pneg %p378
        $region82: #{vqvae_forward.1} parent=71 // pred_check_branch
          %2077 = sbr.rel (%p2075) target = $region84
        $region83: #{vqvae_forward.1} parent=71 // pred_region
          _
        $region84: #{vqvae_forward.1} parent=71 // pred_fallthru
          _
      $region72: #{vqvae_forward.1} parent=5 // pred_fallthru
        _
      %p2078 = scmp.le.s32.totalorder 2, %s25
      // Predicated region
      $region85: #{vqvae_forward.1} parent=5 // pred_check
        %p2079 = pneg %p2078
      $region86: #{vqvae_forward.1} parent=5 // pred_check_branch
        %2081 = sbr.rel (%p2079) target = $region88
      $region87: #{vqvae_forward.1} parent=5 // pred_region
        %s2082 = ssub.s32 %s25, 2
        // Predicated region
        $region89: #{vqvae_forward.1} parent=87 // pred_check
          %p2083 = pneg %p332
        $region90: #{vqvae_forward.1} parent=87 // pred_check_branch
          %2085 = sbr.rel (%p2083) target = $region92
        $region91: #{vqvae_forward.1} parent=87 // pred_region
          %s2086 = sand.u32 %s317, 1
          %s2087 = scalar_lea.sflag [#allocation3], %s2086
          %s2088 = sand.u32 %s317, 1
          %s2089 = smul.addr %s2088, 32
          %s2090 = scalar_lea.vmem [#allocation2], %s2089
          %2092 = dma.done %s2087, 512
        $region92: #{vqvae_forward.1} parent=87 // pred_fallthru
          _
        // Predicated region
        $region93: #{vqvae_forward.1} parent=87 // pred_check
          %p2093 = pneg %p358
        $region94: #{vqvae_forward.1} parent=87 // pred_check_branch
          %2095 = sbr.rel (%p2093) target = $region96
        $region95: #{vqvae_forward.1} parent=87 // pred_region
          %s2096 = smul.u32 2, %s31
          %p2097 = scmp.lt.s32.totalorder %s2096, 3
          %s2098 = scalar_select %p2097, %s2096, 3
          %s2099 = smul.addr %s2098, 2
          %s2100 = smul.addr %s2099, 8
          %s2101 = scalar_lea.vmem %s14, %s2100
        $region96: #{vqvae_forward.1} parent=87 // pred_fallthru
          _
        // Predicated region
        $region97: #{vqvae_forward.1} parent=87 // pred_check
          %p2102 = pneg %p384
        $region98: #{vqvae_forward.1} parent=87 // pred_check_branch
          %2104 = sbr.rel (%p2102) target = $region100
        $region99: #{vqvae_forward.1} parent=87 // pred_region
          %p2105 = scmp.lt.s32.totalorder %s31, 1
          %s2106 = scalar_select %p2105, %s31, 1
          %s2107 = scalar_lea.vmem %s15, %s2106
        $region100: #{vqvae_forward.1} parent=87 // pred_fallthru
          _
      $region88: #{vqvae_forward.1} parent=5 // pred_fallthru
        _
    $region6: #{vqvae_forward.1} parent=1 // loop_footer
      %s29 = sadd.s32 1, %s25
    $region7: #{vqvae_forward.1} parent=1 // loop_footer_branch
      %24 = sbr.rel target = $region3
    $region8: #{vqvae_forward.1} parent=1 // loop_exit
      _
    %2108 = vsyncpa [#allocation3], 1
    %s2109 = scalar_lea.sflag [#allocation3], 1
    %2110 = vsyncpa %s2109, 1

</llo_original>
